<compile_context>
chip_gen: v6e
topology: v6e:2x2x1
jax: 0.10.0
libtpu: 0.0.40
codegen_flags: <defaults>
</compile_context>

<pallas_src>
import functools

import jax
import jax.numpy as jnp
from jax.experimental import pallas as pl
from jax.experimental.pallas import tpu as pltpu


# ---------------------------------------------------------------------------
# small helpers
# ---------------------------------------------------------------------------

def _round_up(n, m):
    return ((n + m - 1) // m) * m


def _softplus(x):
    # log(1 + exp(x)), numerically stable; only max/abs/exp/log.
    return jnp.maximum(x, 0.0) + jnp.log(1.0 + jnp.exp(-jnp.abs(x)))


def _sigmoid(x, approx):
    # approx=True routes the divide to the EUP approximate-reciprocal path (v5e relief).
    return pl.reciprocal(1.0 + jnp.exp(-x), approx=approx)


def _rmsnorm(x, gain, eps, n_true):
    # n_true is the un-padded feature count (padded lanes are zero, so sum is exact).
    ms = jnp.sum(x * x, axis=-1, keepdims=True) * (1.0 / n_true)
    return x * jax.lax.rsqrt(ms + eps) * gain


def _physical_vmem_bytes():
    try:
        info = pltpu.get_tpu_info()
        for name in ("vmem_capacity_bytes", "vmem_size_bytes", "vmem_bytes"):
            v = getattr(info, name, None)
            if v:
                return int(v)
    except Exception:
        pass
    return 128 << 20  # v5e / v6e default; v7x has 64 MiB


def _vmem_limit(required_bytes):
    # Leave ~16 MiB headroom below physical VMEM for compiler-internal scratch.
    cap = max(_physical_vmem_bytes() - (16 << 20), 32 << 20)
    return int(min(max(int(required_bytes), 32 << 20), cap))


# Grid-invariant inputs: request single-buffering (their index_map is constant, so
# double-buffering only doubles VMEM). Fall back silently if the installed Pallas
# rejects pipeline_mode / Buffered(1).
_SINGLE_BUFFER_INVARIANTS = [hasattr(pl, "Buffered")]


def _const_spec(shape, single_buffer):
    nd = len(shape)
    idx = lambda *_: (0,) * nd
    if single_buffer:
        try:
            return pl.BlockSpec(shape, idx, pipeline_mode=pl.Buffered(1))
        except Exception:
            pass
    return pl.BlockSpec(shape, idx)


def _call_with_single_buffer_fallback(run_fn):
    if _SINGLE_BUFFER_INVARIANTS[0]:
        try:
            return run_fn(True)
        except Exception:
            _SINGLE_BUFFER_INVARIANTS[0] = False
    return run_fn(False)


# ---------------------------------------------------------------------------
# parameter preparation (hoisted out of the per-call path)
# ---------------------------------------------------------------------------

def prepare_sioconv_block_params(p, *, ffn_weight_dtype=None):
    """Repack PyTorch-convention (out,in) weights ONCE per parameter update."""
    D = p["w_lnz"].shape[0]
    hid = p["w_fc"].shape[0]
    Dp = _round_up(D, 128)        # lane-dense FFN output stores
    hid_p = _round_up(hid, 128)   # 128-aligned fc|fc_gate split
    wdt = jnp.dtype(ffn_weight_dtype) if ffn_weight_dtype is not None else jnp.float32
    f32 = jnp.float32

    def pad2(a, r, c):
        return jnp.pad(a, ((0, r - a.shape[0]), (0, c - a.shape[1])))

    prep = {
        "dim": D, "hid": hid, "Dp": Dp, "hid_p": hid_p,
        # ----- kernel 1: fused [fc_ln_z | fc_dt | fc_y_gate] + fc_y -----
        "g_sio": p["g_sio"].reshape(1, D).astype(f32),
        "w_zdg": jnp.concatenate([p["w_lnz"].T, p["w_dt"].T, p["w_yg"].T], axis=1).astype(f32),
        "b_zdg": jnp.concatenate([p["b_lnz"], p["b_dt"], p["b_yg"]]).reshape(1, 3 * D).astype(f32),
        "w_y": p["w_y"].T.astype(f32),
        "b_y": p["b_y"].reshape(1, D).astype(f32),
    }

    # ----- kernel 2: fused [fc | fc_gate], zero-padded to (Dp, 2*hid_p) (exact) -----
    w_fc_t = pad2(p["w_fc"].T.astype(f32), Dp, hid_p)
    w_gt_t = pad2(p["w_gate"].T.astype(f32), Dp, hid_p)
    prep["w12"] = jnp.concatenate([w_fc_t, w_gt_t], axis=1).astype(wdt)
    b_fc = jnp.pad(p["b_fc"], (0, hid_p - hid))
    b_gt = jnp.pad(p["b_gate"], (0, hid_p - hid))
    prep["b12"] = jnp.concatenate([b_fc, b_gt]).reshape(1, 2 * hid_p).astype(f32)
    prep["w3"] = pad2(p["w_out"].T.astype(f32), hid_p, Dp).astype(wdt)
    prep["b3"] = jnp.pad(p["b_out"], (0, Dp - D)).reshape(1, Dp).astype(f32)
    prep["g_ffn"] = jnp.pad(p["g_ffn"], (0, Dp - D)).reshape(1, Dp).astype(f32)
    return prep


# ---------------------------------------------------------------------------
# Kernel 1: RMSNorm + SioConvPSLayer + residual  (Bt batch elements per grid step)
# ---------------------------------------------------------------------------

def _sioconv_kernel(x_ref, hid_ref, g_ref, wz_ref, bz_ref, wy_ref, by_ref,
                    xmid_ref, h_ref, *, eps, scan_dtype, approx_recip):
    bt, L, D = x_ref.shape
    x = x_ref[...].astype(jnp.float32)                      # (bt, L, D)
    xf = x.reshape(bt * L, D)                               # leading-dim merge (layout no-op)
    xn = _rmsnorm(xf, g_ref[...], eps, D)

    # One fused (bt*L, D) @ (D, 3D) matmul: [fc_ln_z | fc_dt | fc_y_gate].
    zdg = jnp.dot(xn, wz_ref[...], preferred_element_type=jnp.float32) + bz_ref[...]
    z_lin = zdg[:, 0 * D:1 * D]
    dt = zdg[:, 1 * D:2 * D]
    gate = zdg[:, 2 * D:3 * D]

    ln_z = -_softplus(-z_lin)                               # log sigma(z_lin)
    ln_da = -_softplus(-dt)                                 # log sigma(dt)
    ln_o_da = ln_da - dt                                    # log sigma(-dt) (exact identity)
    ln_z_da = (ln_z + ln_da).reshape(bt, L, D)
    ln_o_da = ln_o_da.reshape(bt, L, D)

    # Lower-triangular ones mask generated in-kernel (no HBM traffic / VMEM double-buffer).
    row = jax.lax.broadcasted_iota(jnp.int32, (L, L), 0)
    col = jax.lax.broadcasted_iota(jnp.int32, (L, L), 1)
    tri = jnp.broadcast_to((row >= col).astype(jnp.float32), (bt, L, L))

    # cumsum over the sequence as a triangular batched matmul (kept in f32 for accuracy).
    c = jnp.einsum('blk,bkd->bld', tri, ln_o_da, preferred_element_type=jnp.float32)

    # logcumsumexp without the log/exp round trip:
    #   S = tri @ exp(a - m),  m = per-feature max  =>  h_inner = S * exp(m) * exp(c)
    # TODO(synk): for production seq lengths, tile the sequence axis and carry running
    # cumsum / running max / running sum-exp in VMEM scratch (blocked scan) so the
    # triangular block is (Lt,Lt) and the global-max shift does not underflow early rows.
    a = ln_z_da - c
    m = jnp.max(a, axis=1, keepdims=True)                   # (bt, 1, D)
    pexp = jnp.exp(a - m)
    s = jnp.einsum('blk,bkd->bld', tri.astype(scan_dtype), pexp.astype(scan_dtype),
                   preferred_element_type=jnp.float32)
    e_c = jnp.exp(c)
    h = s * (jnp.exp(m) * e_c) + e_c * hid_ref[...]         # h_inner + h_cross

    hf = h.reshape(bt * L, D)
    y = jnp.dot(hf, wy_ref[...], preferred_element_type=jnp.float32) + by_ref[...]
    y = y * (gate * _sigmoid(gate, approx_recip))           # fc_y(h) * SiLU(fc_y_gate(x_norm))

    xmid_ref[...] = (y + xf).reshape(bt, L, D).astype(xmid_ref.dtype)
    h_ref[...] = h.astype(h_ref.dtype)


def sioconv_layer_pallas(x, hidden, prep, *, bt=None, scan_dtype=jnp.float32,
                         approx_recip=False, eps=1e-6):
    """x: (B, L, D); hidden: (B, D). `prep` from prepare_sioconv_block_params."""
    B, L, D = x.shape
    if bt is None:
        # Enough batch rows per step to fill MXU rows / amortize per-step overhead.
        # TODO(synk): on v7x with very small B, prefer bt=1 (or a 128-wide feature-chunk
        # parallel axis) so both TensorCores get work.
        bt = max(1, min(B, 128 // max(L, 1)))
    bt = max(1, min(bt, B))
    Bp = _round_up(B, bt)

    hidden3 = hidden.reshape(B, 1, D)
    if Bp != B:
        x = jnp.pad(x, ((0, Bp - B), (0, 0), (0, 0)))
        hidden3 = jnp.pad(hidden3, ((0, Bp - B), (0, 0), (0, 0)))
    grid = (Bp // bt,)

    seq_spec = pl.BlockSpec((bt, L, D), lambda b: (b, 0, 0))
    hid_spec = pl.BlockSpec((bt, 1, D), lambda b: (b, 0, 0))

    itemsize = jnp.dtype(x.dtype).itemsize
    vmem_req = (
        3 * 2 * bt * L * D * itemsize           # x in + (x_mid, h) out, double-buffered
        + 2 * (3 * D * D + D * D + 5 * D) * 4   # packed weights / biases / gain
        + 16 * bt * L * D * 4                   # live f32 intermediates (generous)
        + (bt + 1) * L * L * 4                  # tri mask + broadcast
        + (8 << 20)
    )

    def _run(single_buffer):
        cspec = lambda shape: _const_spec(shape, single_buffer)
        return pl.pallas_call(
            functools.partial(_sioconv_kernel, eps=eps, scan_dtype=scan_dtype,
                              approx_recip=approx_recip),
            out_shape=(jax.ShapeDtypeStruct((Bp, L, D), x.dtype),
                       jax.ShapeDtypeStruct((Bp, L, D), x.dtype)),
            grid_spec=pltpu.PrefetchScalarGridSpec(
                num_scalar_prefetch=0,
                grid=grid,
                in_specs=[
                    seq_spec,                  # x
                    hid_spec,                  # hidden
                    cspec((1, D)),             # RMSNorm gain
                    cspec((D, 3 * D)),         # fused [ln_z | dt | y_gate] weight
                    cspec((1, 3 * D)),         # fused bias
                    cspec((D, D)),             # fc_y weight
                    cspec((1, D)),             # fc_y bias
                ],
                out_specs=[seq_spec, seq_spec],
            ),
            compiler_params=pltpu.CompilerParams(
                dimension_semantics=("parallel",),
                vmem_limit_bytes=_vmem_limit(vmem_req)),
        )(x, hidden3, prep["g_sio"], prep["w_zdg"], prep["b_zdg"],
          prep["w_y"], prep["b_y"])

    x_mid, h = _call_with_single_buffer_fallback(_run)
    return x_mid[:B], h[:B]


# ---------------------------------------------------------------------------
# Kernel 2: RMSNorm + SwiGLU + residual, row-tiled over batch*seq
# ---------------------------------------------------------------------------

def _ffn_kernel(x_ref, g_ref, w12_ref, b12_ref, w3_ref, b3_ref, o_ref,
                *, dim, hid_p, eps, approx_recip):
    x = x_ref[...].astype(jnp.float32)                      # (tm, Dp); lanes >= dim are zero
    xn = _rmsnorm(x, g_ref[...], eps, dim)

    # Fused fc|fc_gate: one (tm, Dp) @ (Dp, 2*hid_p) matmul, f32 accumulation.
    hg = jnp.dot(xn.astype(w12_ref.dtype), w12_ref[...],
                 preferred_element_type=jnp.float32) + b12_ref[...]
    h = hg[:, :hid_p]                                       # 128-aligned, tile-boundary slices
    g = hg[:, hid_p:]
    gated = h * (g * _sigmoid(g, approx_recip))             # fc(x) * SiLU(fc_gate(x))

    out = jnp.dot(gated.astype(w3_ref.dtype), w3_ref[...],
                  preferred_element_type=jnp.float32) + b3_ref[...]
    o_ref[...] = (out + x).astype(o_ref.dtype)              # residual add (padded lanes stay 0)


def ffn_swiglu_pallas(x, prep, *, tm=None, approx_recip=False, eps=1e-6):
    *lead, D = x.shape
    Dp, hid_p = prep["Dp"], prep["hid_p"]
    x2 = x.reshape(-1, D)
    M = x2.shape[0]

    phys = _physical_vmem_bytes()
    if tm is None:
        tm = 512 if phys > (64 << 20) else 256   # v5e/v6e vs v7x default row tile
    tm = max(8, _round_up(tm, 8))
    tm_eff = min(tm, _round_up(M, 8))
    Mp = _round_up(M, tm_eff)

    if Mp != M or Dp != D:
        x2 = jnp.pad(x2, ((0, Mp - M), (0, Dp - D)))
    grid = (Mp // tm_eff,)

    wbytes = jnp.dtype(prep["w12"].dtype).itemsize
    vmem_req = (
        2 * 2 * tm_eff * Dp * 4                        # x in + out blocks (double-buffered)
        + 2 * (Dp * 2 * hid_p + hid_p * Dp) * wbytes   # weights (worst case: double-buffered)
        + 2 * (2 * hid_p + 2 * Dp) * 4                 # biases + norm gain
        + 4 * tm_eff * 2 * hid_p * 4                   # live f32 intermediates
        + (8 << 20)
    )
    # TODO(synk): for production-sized hid that cannot stay resident on v7x (64 MiB VMEM),
    # add an 'arbitrary' hid grid axis with a VMEM f32 accumulator (pl.when init/finalize).

    def _run(single_buffer):
        cspec = lambda shape: _const_spec(shape, single_buffer)
        return pl.pallas_call(
            functools.partial(_ffn_kernel, dim=D, hid_p=hid_p, eps=eps,
                              approx_recip=approx_recip),
            out_shape=jax.ShapeDtypeStruct((Mp, Dp), x.dtype),
            grid_spec=pltpu.PrefetchScalarGridSpec(
                num_scalar_prefetch=0,
                grid=grid,
                in_specs=[
                    pl.BlockSpec((tm_eff, Dp), lambda i: (i, 0)),   # x rows
                    cspec((1, Dp)),                                  # RMSNorm gain
                    cspec((Dp, 2 * hid_p)),                          # fused fc|fc_gate weight
                    cspec((1, 2 * hid_p)),                           # fused bias
                    cspec((hid_p, Dp)),                              # fc_out weight
                    cspec((1, Dp)),                                  # fc_out bias
                ],
                out_specs=pl.BlockSpec((tm_eff, Dp), lambda i: (i, 0)),
            ),
            compiler_params=pltpu.CompilerParams(
                dimension_semantics=("parallel",),
                vmem_limit_bytes=_vmem_limit(vmem_req)),
        )(x2, prep["g_ffn"], prep["w12"], prep["b12"], prep["w3"], prep["b3"])

    out2 = _call_with_single_buffer_fallback(_run)
    return out2[:M, :D].reshape(*lead, D)


# ---------------------------------------------------------------------------
# Full block wrapper
# ---------------------------------------------------------------------------

def sioconv_block_pallas(x, hidden, prep, *, bt=None, tm=None,
                         scan_dtype=jnp.float32, approx_recip=False):
    x_mid, h = sioconv_layer_pallas(x, hidden, prep, bt=bt, scan_dtype=scan_dtype,
                                    approx_recip=approx_recip)
    out = ffn_swiglu_pallas(x_mid, prep, tm=tm, approx_recip=approx_recip)
    return out, h


# ---------------------------------------------------------------------------
# Pure-JAX reference (mirrors the PyTorch module)
# ---------------------------------------------------------------------------

def _logcumsumexp_ref(x, axis):
    outs = []
    for l in range(x.shape[axis]):
        pre = jax.lax.slice_in_dim(x, 0, l + 1, axis=axis)
        outs.append(jax.nn.logsumexp(pre, axis=axis, keepdims=True))
    return jnp.concatenate(outs, axis=axis)


def sioconv_block_ref(x, hidden, p, eps=1e-6):
    def rms(v, g):
        return v * jax.lax.rsqrt(jnp.mean(v * v, axis=-1, keepdims=True) + eps) * g

    residual = x
    xn = rms(x, p["g_sio"])
    ln_z = -jax.nn.softplus(-(xn @ p["w_lnz"].T + p["b_lnz"]))
    dt = xn @ p["w_dt"].T + p["b_dt"]
    ln_da = -jax.nn.softplus(-dt)
    ln_o_da = -jax.nn.softplus(dt)
    ln_z_da = ln_z + ln_da
    c = jnp.cumsum(ln_o_da, axis=1)
    h_inner = jnp.exp(_logcumsumexp_ref(ln_z_da - c, axis=1) + c)
    h_cross = jnp.exp(c) * hidden[:, None, :]
    h = h_inner + h_cross
    y = (h @ p["w_y"].T + p["b_y"]) * jax.nn.silu(xn @ p["w_yg"].T + p["b_yg"])
    x1 = y + residual

    residual = x1
    xn2 = rms(x1, p["g_ffn"])
    ff = (xn2 @ p["w_fc"].T + p["b_fc"]) * jax.nn.silu(xn2 @ p["w_gate"].T + p["b_gate"])
    out = ff @ p["w_out"].T + p["b_out"]
    return out + residual, h


# ---------------------------------------------------------------------------

if __name__ == "__main__":
    batch, seq, dim, hid = 2, 8, 32, 64

    key = jax.random.PRNGKey(0)
    ks = jax.random.split(key, 18)
    scale = 0.1

    x = jax.random.normal(ks[0], (batch, seq, dim), dtype=jnp.float32)
    hidden = 0.5 * jax.random.normal(ks[1], (batch, dim), dtype=jnp.float32)

    def linear(kw, kb, out_d, in_d):
        return (scale * jax.random.normal(kw, (out_d, in_d), dtype=jnp.float32),
                scale * jax.random.normal(kb, (out_d,), dtype=jnp.float32))

    p = {}
    p["w_lnz"], p["b_lnz"] = linear(ks[2], ks[3], dim, dim)
    p["w_dt"], p["b_dt"] = linear(ks[4], ks[5], dim, dim)
    p["w_y"], p["b_y"] = linear(ks[6], ks[7], dim, dim)
    p["w_yg"], p["b_yg"] = linear(ks[8], ks[9], dim, dim)
    p["w_fc"], p["b_fc"] = linear(ks[10], ks[11], hid, dim)
    p["w_gate"], p["b_gate"] = linear(ks[12], ks[13], hid, dim)
    p["w_out"], p["b_out"] = linear(ks[14], ks[15], dim, hid)
    p["g_sio"] = 1.0 + 0.1 * jax.random.normal(ks[16], (dim,), dtype=jnp.float32)
    p["g_ffn"] = 1.0 + 0.1 * jax.random.normal(ks[17], (dim,), dtype=jnp.float32)

    ref_out, ref_h = sioconv_block_ref(x, hidden, p)

    # --- f32 path (exact matmuls, exact sigmoid) -> tight check ---
    prep_f32 = prepare_sioconv_block_params(p)
    out, h_out = sioconv_block_pallas(x, hidden, prep_f32)
    out, h_out = jax.block_until_ready((out, h_out))
    assert out.shape == (batch, seq, dim) and h_out.shape == (batch, seq, dim)
    assert jnp.allclose(h_out, ref_h, atol=1e-4, rtol=1e-4), "hidden mismatch vs reference"
    assert jnp.allclose(out, ref_out, atol=1e-4, rtol=1e-4), "output mismatch vs reference"

    # --- fast path: bf16 MXU operands (scan + FFN weights) + approx-reciprocal sigmoid ---
    prep_bf16 = prepare_sioconv_block_params(p, ffn_weight_dtype=jnp.bfloat16)
    out_fast, h_fast = sioconv_block_pallas(x, hidden, prep_bf16,
                                            scan_dtype=jnp.bfloat16, approx_recip=True)
    out_fast, h_fast = jax.block_until_ready((out_fast, h_fast))
    assert jnp.allclose(h_fast, ref_h, atol=5e-2, rtol=5e-2), "bf16 hidden mismatch"
    assert jnp.allclose(out_fast, ref_out, atol=5e-2, rtol=5e-2), "bf16 output mismatch"

    print("KERNEL_OK")
</pallas_src>

<mosaic_0001>
module attributes {stable_mosaic.version = 11 : i64} {
  func.func @_sioconv_kernel(%arg0: i32, %arg1: memref<2x8x32xf32, #tpu.memory_space<vmem>>, %arg2: memref<2x1x32xf32, #tpu.memory_space<vmem>>, %arg3: memref<1x32xf32, #tpu.memory_space<vmem>>, %arg4: memref<32x96xf32, #tpu.memory_space<vmem>>, %arg5: memref<1x96xf32, #tpu.memory_space<vmem>>, %arg6: memref<32x32xf32, #tpu.memory_space<vmem>>, %arg7: memref<1x32xf32, #tpu.memory_space<vmem>>, %arg8: memref<2x8x32xf32, #tpu.memory_space<vmem>>, %arg9: memref<2x8x32xf32, #tpu.memory_space<vmem>>) attributes {dimension_semantics = [#tpu.dimension_semantics<parallel>], iteration_bounds = array<i64: 1>, scalar_prefetch = 0 : i64, scratch_operands = 0 : i64, tpu.core_type = #tpu.core_type<tc>, window_params = [{transform_indices = @transform_0, window_bounds = array<i64: 2, 8, 32>}, {transform_indices = @transform_1, window_bounds = array<i64: 2, 1, 32>}, {pipeline_mode = #tpu.pipeline_mode<synchronous>, transform_indices = @transform_2, window_bounds = array<i64: 1, 32>}, {pipeline_mode = #tpu.pipeline_mode<synchronous>, transform_indices = @transform_3, window_bounds = array<i64: 32, 96>}, {pipeline_mode = #tpu.pipeline_mode<synchronous>, transform_indices = @transform_4, window_bounds = array<i64: 1, 96>}, {pipeline_mode = #tpu.pipeline_mode<synchronous>, transform_indices = @transform_5, window_bounds = array<i64: 32, 32>}, {pipeline_mode = #tpu.pipeline_mode<synchronous>, transform_indices = @transform_6, window_bounds = array<i64: 1, 32>}, {transform_indices = @transform_7, window_bounds = array<i64: 2, 8, 32>}, {transform_indices = @transform_8, window_bounds = array<i64: 2, 8, 32>}]} {
    %c0 = arith.constant 0 : index
    %c0_0 = arith.constant 0 : index
    %c0_1 = arith.constant 0 : index
    %0 = vector.load %arg1[%c0, %c0_0, %c0_1] : memref<2x8x32xf32, #tpu.memory_space<vmem>>, vector<2x8x32xf32>
    %1 = vector.shape_cast %0 : vector<2x8x32xf32> to vector<16x32xf32>
    %c0_2 = arith.constant 0 : index
    %c0_3 = arith.constant 0 : index
    %2 = vector.load %arg3[%c0_2, %c0_3] : memref<1x32xf32, #tpu.memory_space<vmem>>, vector<1x32xf32>
    %3 = arith.mulf %1, %1 : vector<16x32xf32>
    %cst = arith.constant dense<0.000000e+00> : vector<16xf32>
    %4 = vector.multi_reduction <add>, %3, %cst [1] : vector<16x32xf32> to vector<16xf32>
    %5 = vector.shape_cast %4 : vector<16xf32> to vector<16x1xf32>
    %cst_4 = arith.constant 3.125000e-02 : f32
    %6 = vector.broadcast %cst_4 : f32 to vector<16x1xf32>
    %7 = arith.mulf %5, %6 : vector<16x1xf32>
    %cst_5 = arith.constant 9.99999997E-7 : f32
    %8 = vector.broadcast %cst_5 : f32 to vector<16x1xf32>
    %9 = arith.addf %7, %8 : vector<16x1xf32>
    %10 = math.rsqrt %9 : vector<16x1xf32>
    %11 = vector.broadcast %10 : vector<16x1xf32> to vector<16x32xf32>
    %12 = arith.mulf %1, %11 : vector<16x32xf32>
    %13 = vector.broadcast %2 : vector<1x32xf32> to vector<16x32xf32>
    %14 = arith.mulf %12, %13 : vector<16x32xf32>
    %c0_6 = arith.constant 0 : index
    %c0_7 = arith.constant 0 : index
    %15 = vector.load %arg4[%c0_6, %c0_7] : memref<32x96xf32, #tpu.memory_space<vmem>>, vector<32x96xf32>
    %cst_8 = arith.constant dense<0.000000e+00> : vector<16x96xf32>
    %16 = tpu.matmul %14, %15, %cst_8 {dimension_numbers = #tpu.dot_dimension_numbers<[1], [0], [0], [1], [0, 0, 1, 1], [], []>} : vector<16x32xf32>, vector<32x96xf32>, vector<16x96xf32> -> vector<16x96xf32>
    %c0_9 = arith.constant 0 : index
    %c0_10 = arith.constant 0 : index
    %17 = vector.load %arg5[%c0_9, %c0_10] : memref<1x96xf32, #tpu.memory_space<vmem>>, vector<1x96xf32>
    %18 = vector.broadcast %17 : vector<1x96xf32> to vector<16x96xf32>
    %19 = arith.addf %16, %18 : vector<16x96xf32>
    %20 = vector.extract_strided_slice %19 {offsets = [0, 0], sizes = [16, 32], strides = [1, 1]} : vector<16x96xf32> to vector<16x32xf32>
    %21 = vector.extract_strided_slice %19 {offsets = [0, 32], sizes = [16, 32], strides = [1, 1]} : vector<16x96xf32> to vector<16x32xf32>
    %22 = vector.extract_strided_slice %19 {offsets = [0, 64], sizes = [16, 32], strides = [1, 1]} : vector<16x96xf32> to vector<16x32xf32>
    %cst_11 = arith.constant 0.000000e+00 : f32
    %23 = vector.broadcast %cst_11 : f32 to vector<16x32xf32>
    %24 = arith.subf %23, %20 : vector<16x32xf32>
    %cst_12 = arith.constant 0.000000e+00 : f32
    %25 = vector.broadcast %cst_12 : f32 to vector<16x32xf32>
    %26 = arith.maximumf %24, %25 : vector<16x32xf32>
    %27 = math.absf %24 : vector<16x32xf32>
    %cst_13 = arith.constant 0.000000e+00 : f32
    %28 = vector.broadcast %cst_13 : f32 to vector<16x32xf32>
    %29 = arith.subf %28, %27 : vector<16x32xf32>
    %30 = math.exp %29 : vector<16x32xf32>
    %cst_14 = arith.constant 1.000000e+00 : f32
    %31 = vector.broadcast %cst_14 : f32 to vector<16x32xf32>
    %32 = arith.addf %31, %30 : vector<16x32xf32>
    %33 = math.log %32 : vector<16x32xf32>
    %34 = arith.addf %26, %33 : vector<16x32xf32>
    %cst_15 = arith.constant 0.000000e+00 : f32
    %35 = vector.broadcast %cst_15 : f32 to vector<16x32xf32>
    %36 = arith.subf %35, %34 : vector<16x32xf32>
    %cst_16 = arith.constant 0.000000e+00 : f32
    %37 = vector.broadcast %cst_16 : f32 to vector<16x32xf32>
    %38 = arith.subf %37, %21 : vector<16x32xf32>
    %cst_17 = arith.constant 0.000000e+00 : f32
    %39 = vector.broadcast %cst_17 : f32 to vector<16x32xf32>
    %40 = arith.maximumf %38, %39 : vector<16x32xf32>
    %41 = math.absf %38 : vector<16x32xf32>
    %cst_18 = arith.constant 0.000000e+00 : f32
    %42 = vector.broadcast %cst_18 : f32 to vector<16x32xf32>
    %43 = arith.subf %42, %41 : vector<16x32xf32>
    %44 = math.exp %43 : vector<16x32xf32>
    %cst_19 = arith.constant 1.000000e+00 : f32
    %45 = vector.broadcast %cst_19 : f32 to vector<16x32xf32>
    %46 = arith.addf %45, %44 : vector<16x32xf32>
    %47 = math.log %46 : vector<16x32xf32>
    %48 = arith.addf %40, %47 : vector<16x32xf32>
    %cst_20 = arith.constant 0.000000e+00 : f32
    %49 = vector.broadcast %cst_20 : f32 to vector<16x32xf32>
    %50 = arith.subf %49, %48 : vector<16x32xf32>
    %51 = arith.subf %50, %21 : vector<16x32xf32>
    %52 = arith.addf %36, %50 : vector<16x32xf32>
    %53 = vector.shape_cast %52 : vector<16x32xf32> to vector<2x8x32xf32>
    %54 = vector.shape_cast %51 : vector<16x32xf32> to vector<2x8x32xf32>
    %55 = tpu.iota {dimensions = array<i32: 0>} : vector<8x8xi32>
    %56 = tpu.iota {dimensions = array<i32: 1>} : vector<8x8xi32>
    %57 = arith.cmpi sge, %55, %56 : vector<8x8xi32>
    %58 = arith.extui %57 : vector<8x8xi1> to vector<8x8xi32>
    %59 = arith.sitofp %58 : vector<8x8xi32> to vector<8x8xf32>
    %60 = vector.shape_cast %59 : vector<8x8xf32> to vector<1x8x8xf32>
    %61 = vector.broadcast %60 : vector<1x8x8xf32> to vector<2x8x8xf32>
    "tpu.trace_start"() <{level = 10 : i32, message = "blk,bkd->bld"}> : () -> ()
    %cst_21 = arith.constant dense<0.000000e+00> : vector<2x8x32xf32>
    %62 = tpu.matmul %61, %54, %cst_21 {dimension_numbers = #tpu.dot_dimension_numbers<[2], [1], [1], [2], [0, 0, 0, 1, 1, 2], [0], [0]>} : vector<2x8x8xf32>, vector<2x8x32xf32>, vector<2x8x32xf32> -> vector<2x8x32xf32>
    "tpu.trace_stop"() : () -> ()
    %63 = arith.subf %53, %62 : vector<2x8x32xf32>
    %cst_22 = arith.constant dense<0xFF800000> : vector<2x32xf32>
    %64 = vector.multi_reduction <maximumf>, %63, %cst_22 [1] : vector<2x8x32xf32> to vector<2x32xf32>
    %65 = vector.shape_cast %64 : vector<2x32xf32> to vector<2x1x32xf32>
    %66 = vector.broadcast %65 : vector<2x1x32xf32> to vector<2x8x32xf32>
    %67 = arith.subf %63, %66 : vector<2x8x32xf32>
    %68 = math.exp %67 : vector<2x8x32xf32>
    "tpu.trace_start"() <{level = 10 : i32, message = "blk,bkd->bld"}> : () -> ()
    %cst_23 = arith.constant dense<0.000000e+00> : vector<2x8x32xf32>
    %69 = tpu.matmul %61, %68, %cst_23 {dimension_numbers = #tpu.dot_dimension_numbers<[2], [1], [1], [2], [0, 0, 0, 1, 1, 2], [0], [0]>} : vector<2x8x8xf32>, vector<2x8x32xf32>, vector<2x8x32xf32> -> vector<2x8x32xf32>
    "tpu.trace_stop"() : () -> ()
    %70 = math.exp %62 : vector<2x8x32xf32>
    %71 = math.exp %65 : vector<2x1x32xf32>
    %72 = vector.broadcast %71 : vector<2x1x32xf32> to vector<2x8x32xf32>
    %73 = arith.mulf %72, %70 : vector<2x8x32xf32>
    %74 = arith.mulf %69, %73 : vector<2x8x32xf32>
    %c0_24 = arith.constant 0 : index
    %c0_25 = arith.constant 0 : index
    %c0_26 = arith.constant 0 : index
    %75 = vector.load %arg2[%c0_24, %c0_25, %c0_26] : memref<2x1x32xf32, #tpu.memory_space<vmem>>, vector<2x1x32xf32>
    %76 = vector.broadcast %75 : vector<2x1x32xf32> to vector<2x8x32xf32>
    %77 = arith.mulf %70, %76 : vector<2x8x32xf32>
    %78 = arith.addf %74, %77 : vector<2x8x32xf32>
    %79 = vector.shape_cast %78 : vector<2x8x32xf32> to vector<16x32xf32>
    %c0_27 = arith.constant 0 : index
    %c0_28 = arith.constant 0 : index
    %80 = vector.load %arg6[%c0_27, %c0_28] : memref<32x32xf32, #tpu.memory_space<vmem>>, vector<32x32xf32>
    %cst_29 = arith.constant dense<0.000000e+00> : vector<16x32xf32>
    %81 = tpu.matmul %79, %80, %cst_29 {dimension_numbers = #tpu.dot_dimension_numbers<[1], [0], [0], [1], [0, 0, 1, 1], [], []>} : vector<16x32xf32>, vector<32x32xf32>, vector<16x32xf32> -> vector<16x32xf32>
    %c0_30 = arith.constant 0 : index
    %c0_31 = arith.constant 0 : index
    %82 = vector.load %arg7[%c0_30, %c0_31] : memref<1x32xf32, #tpu.memory_space<vmem>>, vector<1x32xf32>
    %83 = vector.broadcast %82 : vector<1x32xf32> to vector<16x32xf32>
    %84 = arith.addf %81, %83 : vector<16x32xf32>
    %cst_32 = arith.constant 0.000000e+00 : f32
    %85 = vector.broadcast %cst_32 : f32 to vector<16x32xf32>
    %86 = arith.subf %85, %22 : vector<16x32xf32>
    %87 = math.exp %86 : vector<16x32xf32>
    %cst_33 = arith.constant 1.000000e+00 : f32
    %88 = vector.broadcast %cst_33 : f32 to vector<16x32xf32>
    %89 = arith.addf %88, %87 : vector<16x32xf32>
    %90 = tpu.reciprocal %89 : vector<16x32xf32> -> vector<16x32xf32>
    %91 = arith.mulf %22, %90 : vector<16x32xf32>
    %92 = arith.mulf %84, %91 : vector<16x32xf32>
    %93 = arith.addf %92, %1 : vector<16x32xf32>
    %94 = vector.shape_cast %93 : vector<16x32xf32> to vector<2x8x32xf32>
    %c0_34 = arith.constant 0 : index
    %c0_35 = arith.constant 0 : index
    %c0_36 = arith.constant 0 : index
    %95 = vector.load %arg8[%c0_34, %c0_35, %c0_36] : memref<2x8x32xf32, #tpu.memory_space<vmem>>, vector<2x8x32xf32>
    tpu.vector_store %arg8[%c0_34, %c0_35, %c0_36], %94 {strides = array<i32>} : memref<2x8x32xf32, #tpu.memory_space<vmem>>, vector<2x8x32xf32>,
    %c0_37 = arith.constant 0 : index
    %c0_38 = arith.constant 0 : index
    %c0_39 = arith.constant 0 : index
    %96 = vector.load %arg9[%c0_37, %c0_38, %c0_39] : memref<2x8x32xf32, #tpu.memory_space<vmem>>, vector<2x8x32xf32>
    tpu.vector_store %arg9[%c0_37, %c0_38, %c0_39], %78 {strides = array<i32>} : memref<2x8x32xf32, #tpu.memory_space<vmem>>, vector<2x8x32xf32>,
    return
  }
  func.func @transform_0(%arg0: i32) -> (i32, i32, i32) {
    %c0_i32 = arith.constant 0 : i32
    %c0_i32_0 = arith.constant 0 : i32
    %c0_i32_1 = arith.constant 0 : i32
    return %arg0, %c0_i32, %c0_i32_0 : i32, i32, i32
  }
  func.func @transform_1(%arg0: i32) -> (i32, i32, i32) {
    %c0_i32 = arith.constant 0 : i32
    %c0_i32_0 = arith.constant 0 : i32
    %c0_i32_1 = arith.constant 0 : i32
    return %arg0, %c0_i32, %c0_i32_0 : i32, i32, i32
  }
  func.func @transform_2(%arg0: i32) -> (i32, i32) {
    %c0_i32 = arith.constant 0 : i32
    %c0_i32_0 = arith.constant 0 : i32
    %c0_i32_1 = arith.constant 0 : i32
    return %c0_i32, %c0_i32_0 : i32, i32
  }
  func.func @transform_3(%arg0: i32) -> (i32, i32) {
    %c0_i32 = arith.constant 0 : i32
    %c0_i32_0 = arith.constant 0 : i32
    %c0_i32_1 = arith.constant 0 : i32
    return %c0_i32, %c0_i32_0 : i32, i32
  }
  func.func @transform_4(%arg0: i32) -> (i32, i32) {
    %c0_i32 = arith.constant 0 : i32
    %c0_i32_0 = arith.constant 0 : i32
    %c0_i32_1 = arith.constant 0 : i32
    return %c0_i32, %c0_i32_0 : i32, i32
  }
  func.func @transform_5(%arg0: i32) -> (i32, i32) {
    %c0_i32 = arith.constant 0 : i32
    %c0_i32_0 = arith.constant 0 : i32
    %c0_i32_1 = arith.constant 0 : i32
    return %c0_i32, %c0_i32_0 : i32, i32
  }
  func.func @transform_6(%arg0: i32) -> (i32, i32) {
    %c0_i32 = arith.constant 0 : i32
    %c0_i32_0 = arith.constant 0 : i32
    %c0_i32_1 = arith.constant 0 : i32
    return %c0_i32, %c0_i32_0 : i32, i32
  }
  func.func @transform_7(%arg0: i32) -> (i32, i32, i32) {
    %c0_i32 = arith.constant 0 : i32
    %c0_i32_0 = arith.constant 0 : i32
    %c0_i32_1 = arith.constant 0 : i32
    return %arg0, %c0_i32, %c0_i32_0 : i32, i32, i32
  }
  func.func @transform_8(%arg0: i32) -> (i32, i32, i32) {
    %c0_i32 = arith.constant 0 : i32
    %c0_i32_0 = arith.constant 0 : i32
    %c0_i32_1 = arith.constant 0 : i32
    return %arg0, %c0_i32, %c0_i32_0 : i32, i32, i32
  }
}

module attributes {stable_mosaic.version = 11 : i64} {
  func.func @_sioconv_kernel(%arg0: i32, %arg1: memref<2x8x32xf32, #tpu.memory_space<vmem>>, %arg2: memref<2x1x32xf32, #tpu.memory_space<vmem>>, %arg3: memref<1x32xf32, #tpu.memory_space<vmem>>, %arg4: memref<32x96xf32, #tpu.memory_space<vmem>>, %arg5: memref<1x96xf32, #tpu.memory_space<vmem>>, %arg6: memref<32x32xf32, #tpu.memory_space<vmem>>, %arg7: memref<1x32xf32, #tpu.memory_space<vmem>>, %arg8: memref<2x8x32xf32, #tpu.memory_space<vmem>>, %arg9: memref<2x8x32xf32, #tpu.memory_space<vmem>>) attributes {dimension_semantics = [#tpu.dimension_semantics<parallel>], iteration_bounds = array<i64: 1>, scalar_prefetch = 0 : i64, scratch_operands = 0 : i64, tpu.core_type = #tpu.core_type<tc>, window_params = [{transform_indices = @transform_0, window_bounds = array<i64: 2, 8, 32>}, {transform_indices = @transform_1, window_bounds = array<i64: 2, 1, 32>}, {pipeline_mode = #tpu.pipeline_mode<synchronous>, transform_indices = @transform_2, window_bounds = array<i64: 1, 32>}, {pipeline_mode = #tpu.pipeline_mode<synchronous>, transform_indices = @transform_3, window_bounds = array<i64: 32, 96>}, {pipeline_mode = #tpu.pipeline_mode<synchronous>, transform_indices = @transform_4, window_bounds = array<i64: 1, 96>}, {pipeline_mode = #tpu.pipeline_mode<synchronous>, transform_indices = @transform_5, window_bounds = array<i64: 32, 32>}, {pipeline_mode = #tpu.pipeline_mode<synchronous>, transform_indices = @transform_6, window_bounds = array<i64: 1, 32>}, {transform_indices = @transform_7, window_bounds = array<i64: 2, 8, 32>}, {transform_indices = @transform_8, window_bounds = array<i64: 2, 8, 32>}]} {
    %c0 = arith.constant 0 : index
    %c0_0 = arith.constant 0 : index
    %c0_1 = arith.constant 0 : index
    %0 = vector.load %arg1[%c0, %c0_0, %c0_1] : memref<2x8x32xf32, #tpu.memory_space<vmem>>, vector<2x8x32xf32>
    %1 = vector.shape_cast %0 : vector<2x8x32xf32> to vector<16x32xf32>
    %c0_2 = arith.constant 0 : index
    %c0_3 = arith.constant 0 : index
    %2 = vector.load %arg3[%c0_2, %c0_3] : memref<1x32xf32, #tpu.memory_space<vmem>>, vector<1x32xf32>
    %3 = arith.mulf %1, %1 : vector<16x32xf32>
    %cst = arith.constant dense<0.000000e+00> : vector<16xf32>
    %4 = vector.multi_reduction <add>, %3, %cst [1] : vector<16x32xf32> to vector<16xf32>
    %5 = vector.shape_cast %4 : vector<16xf32> to vector<16x1xf32>
    %cst_4 = arith.constant 3.125000e-02 : f32
    %6 = vector.broadcast %cst_4 : f32 to vector<16x1xf32>
    %7 = arith.mulf %5, %6 : vector<16x1xf32>
    %cst_5 = arith.constant 9.99999997E-7 : f32
    %8 = vector.broadcast %cst_5 : f32 to vector<16x1xf32>
    %9 = arith.addf %7, %8 : vector<16x1xf32>
    %10 = math.rsqrt %9 : vector<16x1xf32>
    %11 = vector.broadcast %10 : vector<16x1xf32> to vector<16x32xf32>
    %12 = arith.mulf %1, %11 : vector<16x32xf32>
    %13 = vector.broadcast %2 : vector<1x32xf32> to vector<16x32xf32>
    %14 = arith.mulf %12, %13 : vector<16x32xf32>
    %c0_6 = arith.constant 0 : index
    %c0_7 = arith.constant 0 : index
    %15 = vector.load %arg4[%c0_6, %c0_7] : memref<32x96xf32, #tpu.memory_space<vmem>>, vector<32x96xf32>
    %cst_8 = arith.constant dense<0.000000e+00> : vector<16x96xf32>
    %16 = tpu.matmul %14, %15, %cst_8 {dimension_numbers = #tpu.dot_dimension_numbers<[1], [0], [0], [1], [0, 0, 1, 1], [], []>} : vector<16x32xf32>, vector<32x96xf32>, vector<16x96xf32> -> vector<16x96xf32>
    %c0_9 = arith.constant 0 : index
    %c0_10 = arith.constant 0 : index
    %17 = vector.load %arg5[%c0_9, %c0_10] : memref<1x96xf32, #tpu.memory_space<vmem>>, vector<1x96xf32>
    %18 = vector.broadcast %17 : vector<1x96xf32> to vector<16x96xf32>
    %19 = arith.addf %16, %18 : vector<16x96xf32>
    %20 = vector.extract_strided_slice %19 {offsets = [0, 0], sizes = [16, 32], strides = [1, 1]} : vector<16x96xf32> to vector<16x32xf32>
    %21 = vector.extract_strided_slice %19 {offsets = [0, 32], sizes = [16, 32], strides = [1, 1]} : vector<16x96xf32> to vector<16x32xf32>
    %22 = vector.extract_strided_slice %19 {offsets = [0, 64], sizes = [16, 32], strides = [1, 1]} : vector<16x96xf32> to vector<16x32xf32>
    %cst_11 = arith.constant 0.000000e+00 : f32
    %23 = vector.broadcast %cst_11 : f32 to vector<16x32xf32>
    %24 = arith.subf %23, %20 : vector<16x32xf32>
    %cst_12 = arith.constant 0.000000e+00 : f32
    %25 = vector.broadcast %cst_12 : f32 to vector<16x32xf32>
    %26 = arith.maximumf %24, %25 : vector<16x32xf32>
    %27 = math.absf %24 : vector<16x32xf32>
    %cst_13 = arith.constant 0.000000e+00 : f32
    %28 = vector.broadcast %cst_13 : f32 to vector<16x32xf32>
    %29 = arith.subf %28, %27 : vector<16x32xf32>
    %30 = math.exp %29 : vector<16x32xf32>
    %cst_14 = arith.constant 1.000000e+00 : f32
    %31 = vector.broadcast %cst_14 : f32 to vector<16x32xf32>
    %32 = arith.addf %31, %30 : vector<16x32xf32>
    %33 = math.log %32 : vector<16x32xf32>
    %34 = arith.addf %26, %33 : vector<16x32xf32>
    %cst_15 = arith.constant 0.000000e+00 : f32
    %35 = vector.broadcast %cst_15 : f32 to vector<16x32xf32>
    %36 = arith.subf %35, %34 : vector<16x32xf32>
    %cst_16 = arith.constant 0.000000e+00 : f32
    %37 = vector.broadcast %cst_16 : f32 to vector<16x32xf32>
    %38 = arith.subf %37, %21 : vector<16x32xf32>
    %cst_17 = arith.constant 0.000000e+00 : f32
    %39 = vector.broadcast %cst_17 : f32 to vector<16x32xf32>
    %40 = arith.maximumf %38, %39 : vector<16x32xf32>
    %41 = math.absf %38 : vector<16x32xf32>
    %cst_18 = arith.constant 0.000000e+00 : f32
    %42 = vector.broadcast %cst_18 : f32 to vector<16x32xf32>
    %43 = arith.subf %42, %41 : vector<16x32xf32>
    %44 = math.exp %43 : vector<16x32xf32>
    %cst_19 = arith.constant 1.000000e+00 : f32
    %45 = vector.broadcast %cst_19 : f32 to vector<16x32xf32>
    %46 = arith.addf %45, %44 : vector<16x32xf32>
    %47 = math.log %46 : vector<16x32xf32>
    %48 = arith.addf %40, %47 : vector<16x32xf32>
    %cst_20 = arith.constant 0.000000e+00 : f32
    %49 = vector.broadcast %cst_20 : f32 to vector<16x32xf32>
    %50 = arith.subf %49, %48 : vector<16x32xf32>
    %51 = arith.subf %50, %21 : vector<16x32xf32>
    %52 = arith.addf %36, %50 : vector<16x32xf32>
    %53 = vector.shape_cast %52 : vector<16x32xf32> to vector<2x8x32xf32>
    %54 = vector.shape_cast %51 : vector<16x32xf32> to vector<2x8x32xf32>
    %55 = tpu.iota {dimensions = array<i32: 0>} : vector<8x8xi32>
    %56 = tpu.iota {dimensions = array<i32: 1>} : vector<8x8xi32>
    %57 = arith.cmpi sge, %55, %56 : vector<8x8xi32>
    %58 = arith.extui %57 : vector<8x8xi1> to vector<8x8xi32>
    %59 = arith.sitofp %58 : vector<8x8xi32> to vector<8x8xf32>
    %60 = vector.shape_cast %59 : vector<8x8xf32> to vector<1x8x8xf32>
    %61 = vector.broadcast %60 : vector<1x8x8xf32> to vector<2x8x8xf32>
    "tpu.trace_start"() <{level = 10 : i32, message = "blk,bkd->bld"}> : () -> ()
    %cst_21 = arith.constant dense<0.000000e+00> : vector<2x8x32xf32>
    %62 = tpu.matmul %61, %54, %cst_21 {dimension_numbers = #tpu.dot_dimension_numbers<[2], [1], [1], [2], [0, 0, 0, 1, 1, 2], [0], [0]>} : vector<2x8x8xf32>, vector<2x8x32xf32>, vector<2x8x32xf32> -> vector<2x8x32xf32>
    "tpu.trace_stop"() : () -> ()
    %63 = arith.subf %53, %62 : vector<2x8x32xf32>
    %cst_22 = arith.constant dense<0xFF800000> : vector<2x32xf32>
    %64 = vector.multi_reduction <maximumf>, %63, %cst_22 [1] : vector<2x8x32xf32> to vector<2x32xf32>
    %65 = vector.shape_cast %64 : vector<2x32xf32> to vector<2x1x32xf32>
    %66 = vector.broadcast %65 : vector<2x1x32xf32> to vector<2x8x32xf32>
    %67 = arith.subf %63, %66 : vector<2x8x32xf32>
    %68 = math.exp %67 : vector<2x8x32xf32>
    "tpu.trace_start"() <{level = 10 : i32, message = "blk,bkd->bld"}> : () -> ()
    %cst_23 = arith.constant dense<0.000000e+00> : vector<2x8x32xf32>
    %69 = tpu.matmul %61, %68, %cst_23 {dimension_numbers = #tpu.dot_dimension_numbers<[2], [1], [1], [2], [0, 0, 0, 1, 1, 2], [0], [0]>} : vector<2x8x8xf32>, vector<2x8x32xf32>, vector<2x8x32xf32> -> vector<2x8x32xf32>
    "tpu.trace_stop"() : () -> ()
    %70 = math.exp %62 : vector<2x8x32xf32>
    %71 = math.exp %65 : vector<2x1x32xf32>
    %72 = vector.broadcast %71 : vector<2x1x32xf32> to vector<2x8x32xf32>
    %73 = arith.mulf %72, %70 : vector<2x8x32xf32>
    %74 = arith.mulf %69, %73 : vector<2x8x32xf32>
    %c0_24 = arith.constant 0 : index
    %c0_25 = arith.constant 0 : index
    %c0_26 = arith.constant 0 : index
    %75 = vector.load %arg2[%c0_24, %c0_25, %c0_26] : memref<2x1x32xf32, #tpu.memory_space<vmem>>, vector<2x1x32xf32>
    %76 = vector.broadcast %75 : vector<2x1x32xf32> to vector<2x8x32xf32>
    %77 = arith.mulf %70, %76 : vector<2x8x32xf32>
    %78 = arith.addf %74, %77 : vector<2x8x32xf32>
    %79 = vector.shape_cast %78 : vector<2x8x32xf32> to vector<16x32xf32>
    %c0_27 = arith.constant 0 : index
    %c0_28 = arith.constant 0 : index
    %80 = vector.load %arg6[%c0_27, %c0_28] : memref<32x32xf32, #tpu.memory_space<vmem>>, vector<32x32xf32>
    %cst_29 = arith.constant dense<0.000000e+00> : vector<16x32xf32>
    %81 = tpu.matmul %79, %80, %cst_29 {dimension_numbers = #tpu.dot_dimension_numbers<[1], [0], [0], [1], [0, 0, 1, 1], [], []>} : vector<16x32xf32>, vector<32x32xf32>, vector<16x32xf32> -> vector<16x32xf32>
    %c0_30 = arith.constant 0 : index
    %c0_31 = arith.constant 0 : index
    %82 = vector.load %arg7[%c0_30, %c0_31] : memref<1x32xf32, #tpu.memory_space<vmem>>, vector<1x32xf32>
    %83 = vector.broadcast %82 : vector<1x32xf32> to vector<16x32xf32>
    %84 = arith.addf %81, %83 : vector<16x32xf32>
    %cst_32 = arith.constant 0.000000e+00 : f32
    %85 = vector.broadcast %cst_32 : f32 to vector<16x32xf32>
    %86 = arith.subf %85, %22 : vector<16x32xf32>
    %87 = math.exp %86 : vector<16x32xf32>
    %cst_33 = arith.constant 1.000000e+00 : f32
    %88 = vector.broadcast %cst_33 : f32 to vector<16x32xf32>
    %89 = arith.addf %88, %87 : vector<16x32xf32>
    %90 = tpu.reciprocal %89 : vector<16x32xf32> -> vector<16x32xf32>
    %91 = arith.mulf %22, %90 : vector<16x32xf32>
    %92 = arith.mulf %84, %91 : vector<16x32xf32>
    %93 = arith.addf %92, %1 : vector<16x32xf32>
    %94 = vector.shape_cast %93 : vector<16x32xf32> to vector<2x8x32xf32>
    %c0_34 = arith.constant 0 : index
    %c0_35 = arith.constant 0 : index
    %c0_36 = arith.constant 0 : index
    %95 = vector.load %arg8[%c0_34, %c0_35, %c0_36] : memref<2x8x32xf32, #tpu.memory_space<vmem>>, vector<2x8x32xf32>
    tpu.vector_store %arg8[%c0_34, %c0_35, %c0_36], %94 {strides = array<i32>} : memref<2x8x32xf32, #tpu.memory_space<vmem>>, vector<2x8x32xf32>,
    %c0_37 = arith.constant 0 : index
    %c0_38 = arith.constant 0 : index
    %c0_39 = arith.constant 0 : index
    %96 = vector.load %arg9[%c0_37, %c0_38, %c0_39] : memref<2x8x32xf32, #tpu.memory_space<vmem>>, vector<2x8x32xf32>
    tpu.vector_store %arg9[%c0_37, %c0_38, %c0_39], %78 {strides = array<i32>} : memref<2x8x32xf32, #tpu.memory_space<vmem>>, vector<2x8x32xf32>,
    return
  }
  func.func @transform_0(%arg0: i32) -> (i32, i32, i32) {
    %c0_i32 = arith.constant 0 : i32
    %c0_i32_0 = arith.constant 0 : i32
    %c0_i32_1 = arith.constant 0 : i32
    return %arg0, %c0_i32, %c0_i32_0 : i32, i32, i32
  }
  func.func @transform_1(%arg0: i32) -> (i32, i32, i32) {
    %c0_i32 = arith.constant 0 : i32
    %c0_i32_0 = arith.constant 0 : i32
    %c0_i32_1 = arith.constant 0 : i32
    return %arg0, %c0_i32, %c0_i32_0 : i32, i32, i32
  }
  func.func @transform_2(%arg0: i32) -> (i32, i32) {
    %c0_i32 = arith.constant 0 : i32
    %c0_i32_0 = arith.constant 0 : i32
    %c0_i32_1 = arith.constant 0 : i32
    return %c0_i32, %c0_i32_0 : i32, i32
  }
  func.func @transform_3(%arg0: i32) -> (i32, i32) {
    %c0_i32 = arith.constant 0 : i32
    %c0_i32_0 = arith.constant 0 : i32
    %c0_i32_1 = arith.constant 0 : i32
    return %c0_i32, %c0_i32_0 : i32, i32
  }
  func.func @transform_4(%arg0: i32) -> (i32, i32) {
    %c0_i32 = arith.constant 0 : i32
    %c0_i32_0 = arith.constant 0 : i32
    %c0_i32_1 = arith.constant 0 : i32
    return %c0_i32, %c0_i32_0 : i32, i32
  }
  func.func @transform_5(%arg0: i32) -> (i32, i32) {
    %c0_i32 = arith.constant 0 : i32
    %c0_i32_0 = arith.constant 0 : i32
    %c0_i32_1 = arith.constant 0 : i32
    return %c0_i32, %c0_i32_0 : i32, i32
  }
  func.func @transform_6(%arg0: i32) -> (i32, i32) {
    %c0_i32 = arith.constant 0 : i32
    %c0_i32_0 = arith.constant 0 : i32
    %c0_i32_1 = arith.constant 0 : i32
    return %c0_i32, %c0_i32_0 : i32, i32
  }
  func.func @transform_7(%arg0: i32) -> (i32, i32, i32) {
    %c0_i32 = arith.constant 0 : i32
    %c0_i32_0 = arith.constant 0 : i32
    %c0_i32_1 = arith.constant 0 : i32
    return %arg0, %c0_i32, %c0_i32_0 : i32, i32, i32
  }
  func.func @transform_8(%arg0: i32) -> (i32, i32, i32) {
    %c0_i32 = arith.constant 0 : i32
    %c0_i32_0 = arith.constant 0 : i32
    %c0_i32_1 = arith.constant 0 : i32
    return %arg0, %c0_i32, %c0_i32_0 : i32, i32, i32
  }
}

</mosaic_0001>

<llo_original>
// kernel: tpu_custom_call.1
$region0: #{tpu_custom_call.1}
  #allocation0 [shape = 'u32[]', space=smem, size = 0x4, offset = 0x4, fixed_abs, tag = 'smem constant byte address 0x4 - core index']
  #allocation1 [shape = 'u32[144,128]{1,0:T(1,128)}', space=vmem, size = 0x12000, scoped, tag = 'internal scratch']
  %s0 = inlined_call_operand.hbm [shape: f32[2,8,32], index: 0, kind: input, shape index: {}]
  %s1 = inlined_call_operand.hbm [shape: f32[2,1,32], index: 1, kind: input, shape index: {}]
  %s2 = inlined_call_operand.vmem [shape: f32[1,32], index: 2, kind: input, shape index: {}]
  %s3 = inlined_call_operand.hbm [shape: f32[32,96], index: 3, kind: input, shape index: {}]
  %s4 = inlined_call_operand.vmem [shape: f32[1,96], index: 4, kind: input, shape index: {}]
  %s5 = inlined_call_operand.hbm [shape: f32[32,32], index: 5, kind: input, shape index: {}]
  %s6 = inlined_call_operand.vmem [shape: f32[1,32], index: 6, kind: input, shape index: {}]
  %s7 = inlined_call_operand.hbm [shape: f32[2,8,32], index: 7, kind: output, shape index: {0}]
  %s8 = inlined_call_operand.hbm [shape: f32[2,8,32], index: 8, kind: output, shape index: {1}]
  %9 = xla_tuple %s7, %s8
  %s10 = sld [smem:[#allocation0]]
  $region62: #{tpu_custom_call.1} parent=0
    _
  %s12 = ssub.s32 1, %s10
  %s13 = scalar_select 0, %s12, %s10
  $region1: #{tpu_custom_call.1} parent=0
    #allocation2 [shape = 'u8[8192]{0}', space=vmem, size = 0x2000, scoped, tag = 'input window, operand 0, single buffered']
    #allocation3 [shape = 's32[1]{0}', space=sflag, size = 0x4, scoped, tag = 'scoped memory for tpu_custom_call.1']
    #allocation4 [shape = 's32[1]{0}', space=sflag, size = 0x4, scoped, tag = 'scoped memory for tpu_custom_call.1']
    #allocation5 [shape = 'u8[1024]{0}', space=vmem, size = 0x400, scoped, tag = 'input window, operand 1, single buffered']
    #allocation6 [shape = 's32[1]{0}', space=sflag, size = 0x4, scoped, tag = 'scoped memory for tpu_custom_call.1']
    #allocation7 [shape = 'u8[16384]{0}', space=vmem, size = 0x4000, scoped, tag = 'input window, operand 3, single buffered']
    #allocation8 [shape = 'u8[16384]{0}', space=vmem, size = 0x4000, scoped, tag = 'input window, operand 5, single buffered']
    #allocation9 [shape = 's32[1]{0}', space=sflag, size = 0x4, scoped, tag = 'scoped memory for tpu_custom_call.1']
    #allocation10 [shape = 'u8[8192]{0}', space=vmem, size = 0x2000, scoped, tag = 'output window, operand 0, single buffered']
    #allocation11 [shape = 'u8[8192]{0}', space=vmem, size = 0x2000, scoped, tag = 'output window, operand 1, single buffered']
    #allocation12 [shape = 's32[1]{0}', space=sflag, size = 0x4, scoped, tag = 'scoped memory for tpu_custom_call.1']
    %14 = vsyncpa [#allocation3], 0
    %15 = vsyncpa [#allocation6], 0
    %16 = vsyncpa [#allocation9], 0
    %17 = vsyncpa [#allocation4], 0
    %18 = vsyncpa [#allocation12], 0
    // Predicated region
    $region2: #{tpu_custom_call.1} parent=1 // pred_check
      _
    $region3: #{tpu_custom_call.1} parent=1 // pred_check_branch
      %20 = sbr.rel (0) target = $region5
    $region4: #{tpu_custom_call.1} parent=1 // pred_region
      %s22 = ssub.s32 256, 256
      %23 = vsyncadd [#allocation3], %s22
      %s24 = sshll.u32 [#allocation2], 4
      %s25 = int_to_ptr.vmem [resolvable:$true] %s24
      %30 = dma.hbm_to_vmem [thread:$0]  %s0, 256, %s25, [#allocation3], 128, 128, 8
    $region5: #{tpu_custom_call.1} parent=1 // pred_fallthru
      _
    // Predicated region
    $region6: #{tpu_custom_call.1} parent=1 // pred_check
      _
    $region7: #{tpu_custom_call.1} parent=1 // pred_check_branch
      %32 = sbr.rel (0) target = $region9
    $region8: #{tpu_custom_call.1} parent=1 // pred_region
      %s34 = ssub.s32 32, 32
      %35 = vsyncadd [#allocation6], %s34
      %s36 = sshll.u32 [#allocation5], 4
      %s37 = int_to_ptr.vmem [resolvable:$true] %s36
      %42 = dma.hbm_to_vmem [thread:$0]  %s1, 32, %s37, [#allocation6], 16, 16, 1
    $region9: #{tpu_custom_call.1} parent=1 // pred_fallthru
      _
    // Predicated region
    $region10: #{tpu_custom_call.1} parent=1 // pred_check
      _
    $region11: #{tpu_custom_call.1} parent=1 // pred_check_branch
      %44 = sbr.rel (0) target = $region13
    $region12: #{tpu_custom_call.1} parent=1 // pred_region
      _
    $region13: #{tpu_custom_call.1} parent=1 // pred_fallthru
      _
    // Predicated region
    $region14: #{tpu_custom_call.1} parent=1 // pred_check
      _
    $region15: #{tpu_custom_call.1} parent=1 // pred_check_branch
      %46 = sbr.rel (0) target = $region17
    $region16: #{tpu_custom_call.1} parent=1 // pred_region
      %s48 = ssub.s32 512, 512
      %49 = vsyncadd [#allocation6], %s48
      %s50 = sshll.u32 [#allocation7], 4
      %s51 = int_to_ptr.vmem [resolvable:$true] %s50
      %56 = dma.hbm_to_vmem [thread:$0]  %s3, 512, %s51, [#allocation6], 128, 128, 8
    $region17: #{tpu_custom_call.1} parent=1 // pred_fallthru
      _
    // Predicated region
    $region18: #{tpu_custom_call.1} parent=1 // pred_check
      _
    $region19: #{tpu_custom_call.1} parent=1 // pred_check_branch
      %58 = sbr.rel (0) target = $region21
    $region20: #{tpu_custom_call.1} parent=1 // pred_region
      _
    $region21: #{tpu_custom_call.1} parent=1 // pred_fallthru
      _
    // Predicated region
    $region22: #{tpu_custom_call.1} parent=1 // pred_check
      _
    $region23: #{tpu_custom_call.1} parent=1 // pred_check_branch
      %60 = sbr.rel (0) target = $region25
    $region24: #{tpu_custom_call.1} parent=1 // pred_region
      %s62 = ssub.s32 512, 512
      %63 = vsyncadd [#allocation9], %s62
      %s64 = sshll.u32 [#allocation8], 4
      %s65 = int_to_ptr.vmem [resolvable:$true] %s64
      %70 = dma.hbm_to_vmem [thread:$0]  %s5, 512, %s65, [#allocation9], 128, 128, 8
    $region25: #{tpu_custom_call.1} parent=1 // pred_fallthru
      _
    // Predicated region
    $region26: #{tpu_custom_call.1} parent=1 // pred_check
      _
    $region27: #{tpu_custom_call.1} parent=1 // pred_check_branch
      %72 = sbr.rel (0) target = $region29
    $region28: #{tpu_custom_call.1} parent=1 // pred_region
      _
    $region29: #{tpu_custom_call.1} parent=1 // pred_fallthru
      _
    // Predicated region
    $region30: #{tpu_custom_call.1} parent=1 // pred_check
      _
    $region31: #{tpu_custom_call.1} parent=1 // pred_check_branch
      %74 = sbr.rel (0) target = $region33
    $region32: #{tpu_custom_call.1} parent=1 // pred_region
      %75 = dma.done [#allocation3], 256
    $region33: #{tpu_custom_call.1} parent=1 // pred_fallthru
      _
    // Predicated region
    $region34: #{tpu_custom_call.1} parent=1 // pred_check
      _
    $region35: #{tpu_custom_call.1} parent=1 // pred_check_branch
      %77 = sbr.rel (0) target = $region37
    $region36: #{tpu_custom_call.1} parent=1 // pred_region
      %78 = dma.done [#allocation6], 32
    $region37: #{tpu_custom_call.1} parent=1 // pred_fallthru
      _
    // Predicated region
    $region38: #{tpu_custom_call.1} parent=1 // pred_check
      _
    $region39: #{tpu_custom_call.1} parent=1 // pred_check_branch
      %80 = sbr.rel (0) target = $region41
    $region40: #{tpu_custom_call.1} parent=1 // pred_region
      %81 = dma.done [#allocation6], 512
    $region41: #{tpu_custom_call.1} parent=1 // pred_fallthru
      _
    // Predicated region
    $region42: #{tpu_custom_call.1} parent=1 // pred_check
      _
    $region43: #{tpu_custom_call.1} parent=1 // pred_check_branch
      %83 = sbr.rel (0) target = $region45
    $region44: #{tpu_custom_call.1} parent=1 // pred_region
      %84 = dma.done [#allocation9], 512
    $region45: #{tpu_custom_call.1} parent=1 // pred_fallthru
      _
    %v85 = vld [vmem:[#allocation2] sm:$0xff]
    %v86 = vld [vmem:[#allocation2 + $0x8] sm:$0xff]
    %v87 = vld [vmem:[%s2] sm:$0x1]
    %v88 = vmul.f32 %v85, %v85
    %v89 = vmul.f32 %v86, %v86
    %vm90 = vcmask 261120
    %v91 = vsel %vm90, %v88, 0.0
    %92 = vadd.xlane.f32.xlu0 %v91
    %v93 = vpop.xlane.xlu0 %92
    %v94 = vsel %vm90, %v89, 0.0
    %95 = vadd.xlane.f32.xlu0 %v94
    %v96 = vpop.xlane.xlu0 %95
    %v97 = vmul.f32 %v93, 0.03125
    %v98 = vmul.f32 %v96, 0.03125
    %v99 = vadd.f32 %v97, 1e-06
    %v100 = vadd.f32 %v98, 1e-06
    %v101 = vrsqrt.pop %v99
    %v102 = vrsqrt.pop %v100
    %v103 = vmul.f32 %v85, %v101
    %v104 = vmul.f32 %v86, %v102
    %v106 = vlaneseq
    %v107 = vshrl.u32 %v106, 7
    %v108 = vsub.s32 0, %v107
    %v109 = vrot.slane %v87, %v108
    %v111 = vmul.f32 %v103, %v109
    %v112 = vmul.f32 %v104, %v109
    %v113 = vld [vmem:[#allocation7] sm:$0xff]
    %v114 = vld [vmem:[#allocation7 + $0x8] sm:$0xff]
    %v115 = vld [vmem:[#allocation7 + $0x10] sm:$0xff]
    %v116 = vld [vmem:[#allocation7 + $0x18] sm:$0xff]
    %v117 = vld [vmem:[%s4] sm:$0x1]
    %v119 = vlaneseq
    %v120 = vshrl.u32 %v119, 7
    %v121 = vsub.s32 0, %v120
    %v122 = vrot.slane %v117, %v121
    %v125 = vsel %vm90, %v111, 0
    %v128 = vsel %vm90, %v112, 0
    %130 = vmatprep.subr.mxu0 0.0
    %131 = vmatpush1.msra.mxu0 0.0
    %132 = vmatprep.subr.mxu0 0.0
    %133 = vmatpush1.msra.mxu0 0.0
    %134 = vmatprep.subr.mxu0 0.0
    %135 = vmatpush1.msra.mxu0 0.0
    %136 = vmatprep.subr.mxu0 0.0
    %137 = vmatpush1.msra.mxu0 0.0
    %138 = vmatprep.subr.mxu0 0.0
    %139 = vmatpush1.msra.mxu0 0.0
    %140 = vmatprep.subr.mxu0 0.0
    %141 = vmatpush1.msra.mxu0 0.0
    %142 = vmatprep.subr.mxu0 0.0
    %143 = vmatpush1.msra.mxu0 0.0
    %144 = vmatprep.subr.mxu0 0.0
    %145 = vmatpush1.msra.mxu0 0.0
    %146 = vmatprep.subr.mxu0 0.0
    %147 = vmatpush1.msra.mxu0 0.0
    %148 = vmatprep.subr.mxu0 0.0
    %149 = vmatpush1.msra.mxu0 0.0
    %150 = vmatprep.subr.mxu0 0.0
    %151 = vmatpush1.msra.mxu0 0.0
    %152 = vmatprep.subr.mxu0 0.0
    %153 = vmatpush1.msra.mxu0 0.0
    %154 = vmatprep.subr.mxu0 0.0
    %155 = vmatpush1.msra.mxu0 %v116
    %156 = vmatprep.subr.mxu0 0.0
    %157 = vmatpush1.msra.mxu0 %v115
    %158 = vmatprep.subr.mxu0 0.0
    %159 = vmatpush1.msra.mxu0 %v114
    %160 = vmatprep.subr.mxu0 0.0
    %161 = vmatpush1.msra.mxu0 %v113
    %162 = vmatprep.subr.mxu0 0.0
    %163 = vmatpush2.msra.mxu0 0.0
    %164 = vmatprep.subr.mxu0 0.0
    %165 = vmatpush2.msra.mxu0 0.0
    %166 = vmatprep.subr.mxu0 0.0
    %167 = vmatpush2.msra.mxu0 0.0
    %168 = vmatprep.subr.mxu0 0.0
    %169 = vmatpush2.msra.mxu0 0.0
    %170 = vmatprep.subr.mxu0 0.0
    %171 = vmatpush2.msra.mxu0 0.0
    %172 = vmatprep.subr.mxu0 0.0
    %173 = vmatpush2.msra.mxu0 0.0
    %174 = vmatprep.subr.mxu0 0.0
    %175 = vmatpush2.msra.mxu0 0.0
    %176 = vmatprep.subr.mxu0 0.0
    %177 = vmatpush2.msra.mxu0 0.0
    %178 = vmatprep.subr.mxu0 0.0
    %179 = vmatpush2.msra.mxu0 0.0
    %180 = vmatprep.subr.mxu0 0.0
    %181 = vmatpush2.msra.mxu0 0.0
    %182 = vmatprep.subr.mxu0 0.0
    %183 = vmatpush2.msra.mxu0 0.0
    %184 = vmatprep.subr.mxu0 0.0
    %185 = vmatpush2.msra.mxu0 0.0
    %186 = vmatprep.subr.mxu0 0.0
    %187 = vmatpush2.msra.mxu0 0.0
    %188 = vmatprep.subr.mxu0 0.0
    %189 = vmatpush2.msra.mxu0 0.0
    %190 = vmatprep.subr.mxu0 0.0
    %191 = vmatpush2.msra.mxu0 0.0
    %192 = vmatprep.subr.mxu0 0.0
    %193 = vmatpush2.msra.mxu0 0.0
    %194 = vmatprep.mubr.f32.mxu0 0.0
    %195 = vmatmul.mubr.f32.gmra.mxu0 %v125
    %v196 = vpop.f32.mrf.mxu0
    %v197 = vadd.f32 %v122, %v196
    %v198 = vpop.f32.mrf.mxu0
    %199 = vmatprep.mubr.f32.mxu0 0.0
    %200 = vmatmul.mubr.f32.gmra.mxu0 %v128
    %v201 = vpop.f32.mrf.mxu0
    %v202 = vadd.f32 %v122, %v201
    %v203 = vpop.f32.mrf.mxu0
    %204 = vdwg.mxu0
    %v205 = vsub.f32 0.0, %v197
    %v206 = vsub.f32 0.0, %v202
    %v207 = vmax.f32 %v205, 0.0
    %v208 = vmax.f32 %v206, 0.0
    %v209 = vand.u32 2147483647, %v205
    %v210 = vand.u32 2147483647, %v206
    %v211 = vsub.f32 0.0, %v209
    %v212 = vsub.f32 0.0, %v210
    %v213 = vmul.f32 %v211, 1.442695
    %v214 = vpow.pop %v213
    %v215 = vmul.f32 %v212, 1.442695
    %v216 = vpow.pop %v215
    %v217 = vadd.f32 %v214, 1.0
    %v218 = vadd.f32 %v216, 1.0
    %v219 = vlog2.pop %v217
    %v220 = vmul.f32 %v219, 0.6931472
    %v221 = vlog2.pop %v218
    %v222 = vmul.f32 %v221, 0.6931472
    %v223 = vadd.f32 %v207, %v220
    %v224 = vadd.f32 %v208, %v222
    %v225 = vsub.f32 0.0, %v223
    %v226 = vsub.f32 0.0, %v224
    %v227 = vsub.f32 %v225, %v197
    %v228 = vsub.f32 %v226, %v202
    %231 = vrot.lane.b32.xlu0 %v225, 96
    %v232 = vpop.permute.xlu0 %231
    %233 = vrot.lane.b32.xlu0 %v226, 96
    %v234 = vpop.permute.xlu0 %233
    %v237 = vadd.f32 %v225, %v232
    %v238 = vadd.f32 %v226, %v234
    %v239 = vlaneseq
    %v240 = vshrl.u32 %v239, 7
    %v241 = vlaneseq
    %v242 = vand.u32 %v241, 127
    %vm243 = vcmp.ge.s32.totalorder %v240, %v242
    %v244 = vsel %vm243, 1, 0
    %v245 = vcvt.s32.f32 %v244
    %247 = vrot.lane.b32.xlu0 %v227, 96
    %v248 = vpop.permute.xlu0 %247
    %vm250 = vcmask 64512
    %v252 = vsel %vm250, %v245, 0
    %254 = vmatprep.subr.mxu0 0.0
    %255 = vmatpush1.msra.mxu0 0.0
    %256 = vmatprep.subr.mxu0 0.0
    %257 = vmatpush1.msra.mxu0 0.0
    %258 = vmatprep.subr.mxu0 0.0
    %259 = vmatpush1.msra.mxu0 0.0
    %260 = vmatprep.subr.mxu0 0.0
    %261 = vmatpush1.msra.mxu0 0.0
    %262 = vmatprep.subr.mxu0 0.0
    %263 = vmatpush1.msra.mxu0 0.0
    %264 = vmatprep.subr.mxu0 0.0
    %265 = vmatpush1.msra.mxu0 0.0
    %266 = vmatprep.subr.mxu0 0.0
    %267 = vmatpush1.msra.mxu0 0.0
    %268 = vmatprep.subr.mxu0 0.0
    %269 = vmatpush1.msra.mxu0 0.0
    %270 = vmatprep.subr.mxu0 0.0
    %271 = vmatpush1.msra.mxu0 0.0
    %272 = vmatprep.subr.mxu0 0.0
    %273 = vmatpush1.msra.mxu0 0.0
    %274 = vmatprep.subr.mxu0 0.0
    %275 = vmatpush1.msra.mxu0 0.0
    %276 = vmatprep.subr.mxu0 0.0
    %277 = vmatpush1.msra.mxu0 0.0
    %278 = vmatprep.subr.mxu0 0.0
    %279 = vmatpush1.msra.mxu0 0.0
    %280 = vmatprep.subr.mxu0 0.0
    %281 = vmatpush1.msra.mxu0 0.0
    %282 = vmatprep.subr.mxu0 0.0
    %283 = vmatpush1.msra.mxu0 0.0
    %284 = vmatprep.subr.mxu0 0.0
    %285 = vmatpush1.msra.mxu0 %v248
    %286 = vmatprep.subr.mxu0 0.0
    %287 = vmatpush2.msra.mxu0 0.0
    %288 = vmatprep.subr.mxu0 0.0
    %289 = vmatpush2.msra.mxu0 0.0
    %290 = vmatprep.subr.mxu0 0.0
    %291 = vmatpush2.msra.mxu0 0.0
    %292 = vmatprep.subr.mxu0 0.0
    %293 = vmatpush2.msra.mxu0 0.0
    %294 = vmatprep.subr.mxu0 0.0
    %295 = vmatpush2.msra.mxu0 0.0
    %296 = vmatprep.subr.mxu0 0.0
    %297 = vmatpush2.msra.mxu0 0.0
    %298 = vmatprep.subr.mxu0 0.0
    %299 = vmatpush2.msra.mxu0 0.0
    %300 = vmatprep.subr.mxu0 0.0
    %301 = vmatpush2.msra.mxu0 0.0
    %302 = vmatprep.subr.mxu0 0.0
    %303 = vmatpush2.msra.mxu0 0.0
    %304 = vmatprep.subr.mxu0 0.0
    %305 = vmatpush2.msra.mxu0 0.0
    %306 = vmatprep.subr.mxu0 0.0
    %307 = vmatpush2.msra.mxu0 0.0
    %308 = vmatprep.subr.mxu0 0.0
    %309 = vmatpush2.msra.mxu0 0.0
    %310 = vmatprep.subr.mxu0 0.0
    %311 = vmatpush2.msra.mxu0 0.0
    %312 = vmatprep.subr.mxu0 0.0
    %313 = vmatpush2.msra.mxu0 0.0
    %314 = vmatprep.subr.mxu0 0.0
    %315 = vmatpush2.msra.mxu0 0.0
    %316 = vmatprep.subr.mxu0 0.0
    %317 = vmatpush2.msra.mxu0 0.0
    %318 = vmatprep.mubr.f32.mxu0 0.0
    %319 = vmatmul.mubr.f32.gmra.mxu0 %v252
    %v320 = vpop.f32.mrf.mxu0
    %v321 = vadd.f32 0.0, %v320
    %v322 = vpop.f32.mrf.mxu0
    %323 = vdwg.mxu0
    %325 = vrot.lane.b32.xlu0 %v228, 96
    %v326 = vpop.permute.xlu0 %325
    %328 = vmatprep.subr.mxu0 0.0
    %329 = vmatpush1.msra.mxu0 0.0
    %330 = vmatprep.subr.mxu0 0.0
    %331 = vmatpush1.msra.mxu0 0.0
    %332 = vmatprep.subr.mxu0 0.0
    %333 = vmatpush1.msra.mxu0 0.0
    %334 = vmatprep.subr.mxu0 0.0
    %335 = vmatpush1.msra.mxu0 0.0
    %336 = vmatprep.subr.mxu0 0.0
    %337 = vmatpush1.msra.mxu0 0.0
    %338 = vmatprep.subr.mxu0 0.0
    %339 = vmatpush1.msra.mxu0 0.0
    %340 = vmatprep.subr.mxu0 0.0
    %341 = vmatpush1.msra.mxu0 0.0
    %342 = vmatprep.subr.mxu0 0.0
    %343 = vmatpush1.msra.mxu0 0.0
    %344 = vmatprep.subr.mxu0 0.0
    %345 = vmatpush1.msra.mxu0 0.0
    %346 = vmatprep.subr.mxu0 0.0
    %347 = vmatpush1.msra.mxu0 0.0
    %348 = vmatprep.subr.mxu0 0.0
    %349 = vmatpush1.msra.mxu0 0.0
    %350 = vmatprep.subr.mxu0 0.0
    %351 = vmatpush1.msra.mxu0 0.0
    %352 = vmatprep.subr.mxu0 0.0
    %353 = vmatpush1.msra.mxu0 0.0
    %354 = vmatprep.subr.mxu0 0.0
    %355 = vmatpush1.msra.mxu0 0.0
    %356 = vmatprep.subr.mxu0 0.0
    %357 = vmatpush1.msra.mxu0 0.0
    %358 = vmatprep.subr.mxu0 0.0
    %359 = vmatpush1.msra.mxu0 %v326
    %360 = vmatprep.subr.mxu0 0.0
    %361 = vmatpush2.msra.mxu0 0.0
    %362 = vmatprep.subr.mxu0 0.0
    %363 = vmatpush2.msra.mxu0 0.0
    %364 = vmatprep.subr.mxu0 0.0
    %365 = vmatpush2.msra.mxu0 0.0
    %366 = vmatprep.subr.mxu0 0.0
    %367 = vmatpush2.msra.mxu0 0.0
    %368 = vmatprep.subr.mxu0 0.0
    %369 = vmatpush2.msra.mxu0 0.0
    %370 = vmatprep.subr.mxu0 0.0
    %371 = vmatpush2.msra.mxu0 0.0
    %372 = vmatprep.subr.mxu0 0.0
    %373 = vmatpush2.msra.mxu0 0.0
    %374 = vmatprep.subr.mxu0 0.0
    %375 = vmatpush2.msra.mxu0 0.0
    %376 = vmatprep.subr.mxu0 0.0
    %377 = vmatpush2.msra.mxu0 0.0
    %378 = vmatprep.subr.mxu0 0.0
    %379 = vmatpush2.msra.mxu0 0.0
    %380 = vmatprep.subr.mxu0 0.0
    %381 = vmatpush2.msra.mxu0 0.0
    %382 = vmatprep.subr.mxu0 0.0
    %383 = vmatpush2.msra.mxu0 0.0
    %384 = vmatprep.subr.mxu0 0.0
    %385 = vmatpush2.msra.mxu0 0.0
    %386 = vmatprep.subr.mxu0 0.0
    %387 = vmatpush2.msra.mxu0 0.0
    %388 = vmatprep.subr.mxu0 0.0
    %389 = vmatpush2.msra.mxu0 0.0
    %390 = vmatprep.subr.mxu0 0.0
    %391 = vmatpush2.msra.mxu0 0.0
    %392 = vmatprep.mubr.f32.mxu0 0.0
    %393 = vmatmul.mubr.f32.gmra.mxu0 %v252
    %v394 = vpop.f32.mrf.mxu0
    %v395 = vadd.f32 0.0, %v394
    %v396 = vpop.f32.mrf.mxu0
    %397 = vdwg.mxu0
    %v398 = vsub.f32 %v237, %v321
    %v399 = vsub.f32 %v238, %v395
    %v400 = vsel %vm90, %v398, -inf
    %v401 = vrot.slane %v400, 4
    %v402 = vmax.f32 %v400, %v401
    %v403 = vrot.slane %v402, 2
    %v404 = vmax.f32 %v402, %v403
    %v405 = vrot.slane %v404, 1
    %v406 = vmax.f32 %v404, %v405
    %v407 = vsel %vm90, %v399, -inf
    %v408 = vrot.slane %v407, 4
    %v409 = vmax.f32 %v407, %v408
    %v410 = vrot.slane %v409, 2
    %v411 = vmax.f32 %v409, %v410
    %v412 = vrot.slane %v411, 1
    %v413 = vmax.f32 %v411, %v412
    %v414 = vsub.f32 %v398, %v406
    %v415 = vsub.f32 %v399, %v413
    %v416 = vmul.f32 %v414, 1.442695
    %v417 = vpow.pop %v416
    %v418 = vmul.f32 %v415, 1.442695
    %v419 = vpow.pop %v418
    %420 = vmatprep.subr.mxu0 0.0
    %421 = vmatpush1.msra.mxu0 0.0
    %422 = vmatprep.subr.mxu0 0.0
    %423 = vmatpush1.msra.mxu0 0.0
    %424 = vmatprep.subr.mxu0 0.0
    %425 = vmatpush1.msra.mxu0 0.0
    %426 = vmatprep.subr.mxu0 0.0
    %427 = vmatpush1.msra.mxu0 0.0
    %428 = vmatprep.subr.mxu0 0.0
    %429 = vmatpush1.msra.mxu0 0.0
    %430 = vmatprep.subr.mxu0 0.0
    %431 = vmatpush1.msra.mxu0 0.0
    %432 = vmatprep.subr.mxu0 0.0
    %433 = vmatpush1.msra.mxu0 0.0
    %434 = vmatprep.subr.mxu0 0.0
    %435 = vmatpush1.msra.mxu0 0.0
    %436 = vmatprep.subr.mxu0 0.0
    %437 = vmatpush1.msra.mxu0 0.0
    %438 = vmatprep.subr.mxu0 0.0
    %439 = vmatpush1.msra.mxu0 0.0
    %440 = vmatprep.subr.mxu0 0.0
    %441 = vmatpush1.msra.mxu0 0.0
    %442 = vmatprep.subr.mxu0 0.0
    %443 = vmatpush1.msra.mxu0 0.0
    %444 = vmatprep.subr.mxu0 0.0
    %445 = vmatpush1.msra.mxu0 0.0
    %446 = vmatprep.subr.mxu0 0.0
    %447 = vmatpush1.msra.mxu0 0.0
    %448 = vmatprep.subr.mxu0 0.0
    %449 = vmatpush1.msra.mxu0 0.0
    %450 = vmatprep.subr.mxu0 0.0
    %451 = vmatpush1.msra.mxu0 %v417
    %452 = vmatprep.subr.mxu0 0.0
    %453 = vmatpush2.msra.mxu0 0.0
    %454 = vmatprep.subr.mxu0 0.0
    %455 = vmatpush2.msra.mxu0 0.0
    %456 = vmatprep.subr.mxu0 0.0
    %457 = vmatpush2.msra.mxu0 0.0
    %458 = vmatprep.subr.mxu0 0.0
    %459 = vmatpush2.msra.mxu0 0.0
    %460 = vmatprep.subr.mxu0 0.0
    %461 = vmatpush2.msra.mxu0 0.0
    %462 = vmatprep.subr.mxu0 0.0
    %463 = vmatpush2.msra.mxu0 0.0
    %464 = vmatprep.subr.mxu0 0.0
    %465 = vmatpush2.msra.mxu0 0.0
    %466 = vmatprep.subr.mxu0 0.0
    %467 = vmatpush2.msra.mxu0 0.0
    %468 = vmatprep.subr.mxu0 0.0
    %469 = vmatpush2.msra.mxu0 0.0
    %470 = vmatprep.subr.mxu0 0.0
    %471 = vmatpush2.msra.mxu0 0.0
    %472 = vmatprep.subr.mxu0 0.0
    %473 = vmatpush2.msra.mxu0 0.0
    %474 = vmatprep.subr.mxu0 0.0
    %475 = vmatpush2.msra.mxu0 0.0
    %476 = vmatprep.subr.mxu0 0.0
    %477 = vmatpush2.msra.mxu0 0.0
    %478 = vmatprep.subr.mxu0 0.0
    %479 = vmatpush2.msra.mxu0 0.0
    %480 = vmatprep.subr.mxu0 0.0
    %481 = vmatpush2.msra.mxu0 0.0
    %482 = vmatprep.subr.mxu0 0.0
    %483 = vmatpush2.msra.mxu0 0.0
    %484 = vmatprep.mubr.f32.mxu0 0.0
    %485 = vmatmul.mubr.f32.gmra.mxu0 %v252
    %v486 = vpop.f32.mrf.mxu0
    %v487 = vadd.f32 0.0, %v486
    %v488 = vpop.f32.mrf.mxu0
    %489 = vdwg.mxu0
    %490 = vmatprep.subr.mxu0 0.0
    %491 = vmatpush1.msra.mxu0 0.0
    %492 = vmatprep.subr.mxu0 0.0
    %493 = vmatpush1.msra.mxu0 0.0
    %494 = vmatprep.subr.mxu0 0.0
    %495 = vmatpush1.msra.mxu0 0.0
    %496 = vmatprep.subr.mxu0 0.0
    %497 = vmatpush1.msra.mxu0 0.0
    %498 = vmatprep.subr.mxu0 0.0
    %499 = vmatpush1.msra.mxu0 0.0
    %500 = vmatprep.subr.mxu0 0.0
    %501 = vmatpush1.msra.mxu0 0.0
    %502 = vmatprep.subr.mxu0 0.0
    %503 = vmatpush1.msra.mxu0 0.0
    %504 = vmatprep.subr.mxu0 0.0
    %505 = vmatpush1.msra.mxu0 0.0
    %506 = vmatprep.subr.mxu0 0.0
    %507 = vmatpush1.msra.mxu0 0.0
    %508 = vmatprep.subr.mxu0 0.0
    %509 = vmatpush1.msra.mxu0 0.0
    %510 = vmatprep.subr.mxu0 0.0
    %511 = vmatpush1.msra.mxu0 0.0
    %512 = vmatprep.subr.mxu0 0.0
    %513 = vmatpush1.msra.mxu0 0.0
    %514 = vmatprep.subr.mxu0 0.0
    %515 = vmatpush1.msra.mxu0 0.0
    %516 = vmatprep.subr.mxu0 0.0
    %517 = vmatpush1.msra.mxu0 0.0
    %518 = vmatprep.subr.mxu0 0.0
    %519 = vmatpush1.msra.mxu0 0.0
    %520 = vmatprep.subr.mxu0 0.0
    %521 = vmatpush1.msra.mxu0 %v419
    %522 = vmatprep.subr.mxu0 0.0
    %523 = vmatpush2.msra.mxu0 0.0
    %524 = vmatprep.subr.mxu0 0.0
    %525 = vmatpush2.msra.mxu0 0.0
    %526 = vmatprep.subr.mxu0 0.0
    %527 = vmatpush2.msra.mxu0 0.0
    %528 = vmatprep.subr.mxu0 0.0
    %529 = vmatpush2.msra.mxu0 0.0
    %530 = vmatprep.subr.mxu0 0.0
    %531 = vmatpush2.msra.mxu0 0.0
    %532 = vmatprep.subr.mxu0 0.0
    %533 = vmatpush2.msra.mxu0 0.0
    %534 = vmatprep.subr.mxu0 0.0
    %535 = vmatpush2.msra.mxu0 0.0
    %536 = vmatprep.subr.mxu0 0.0
    %537 = vmatpush2.msra.mxu0 0.0
    %538 = vmatprep.subr.mxu0 0.0
    %539 = vmatpush2.msra.mxu0 0.0
    %540 = vmatprep.subr.mxu0 0.0
    %541 = vmatpush2.msra.mxu0 0.0
    %542 = vmatprep.subr.mxu0 0.0
    %543 = vmatpush2.msra.mxu0 0.0
    %544 = vmatprep.subr.mxu0 0.0
    %545 = vmatpush2.msra.mxu0 0.0
    %546 = vmatprep.subr.mxu0 0.0
    %547 = vmatpush2.msra.mxu0 0.0
    %548 = vmatprep.subr.mxu0 0.0
    %549 = vmatpush2.msra.mxu0 0.0
    %550 = vmatprep.subr.mxu0 0.0
    %551 = vmatpush2.msra.mxu0 0.0
    %552 = vmatprep.subr.mxu0 0.0
    %553 = vmatpush2.msra.mxu0 0.0
    %554 = vmatprep.mubr.f32.mxu0 0.0
    %555 = vmatmul.mubr.f32.gmra.mxu0 %v252
    %v556 = vpop.f32.mrf.mxu0
    %v557 = vadd.f32 0.0, %v556
    %v558 = vpop.f32.mrf.mxu0
    %559 = vdwg.mxu0
    %v560 = vmul.f32 %v321, 1.442695
    %v561 = vpow.pop %v560
    %v562 = vmul.f32 %v395, 1.442695
    %v563 = vpow.pop %v562
    %v564 = vmul.f32 %v406, 1.442695
    %v565 = vpow.pop %v564
    %v566 = vmul.f32 %v413, 1.442695
    %v567 = vpow.pop %v566
    %v568 = vmul.f32 %v565, %v561
    %v569 = vmul.f32 %v567, %v563
    %v570 = vmul.f32 %v487, %v568
    %v571 = vmul.f32 %v557, %v569
    %v572 = vld [vmem:[#allocation5] sm:$0x1]
    %v573 = vld [vmem:[#allocation5 + $0x1] sm:$0x1]
    %v576 = vlaneseq
    %v577 = vshrl.u32 %v576, 7
    %v578 = vsub.s32 0, %v577
    %v579 = vrot.slane %v572, %v578
    %v580 = vlaneseq
    %v581 = vshrl.u32 %v580, 7
    %v582 = vsub.s32 0, %v581
    %v583 = vrot.slane %v573, %v582
    %v586 = vmul.f32 %v561, %v579
    %v587 = vmul.f32 %v563, %v583
    %v588 = vadd.f32 %v570, %v586
    %v589 = vadd.f32 %v571, %v587
    %v590 = vld [vmem:[#allocation8] sm:$0xff]
    %v591 = vld [vmem:[#allocation8 + $0x8] sm:$0xff]
    %v592 = vld [vmem:[#allocation8 + $0x10] sm:$0xff]
    %v593 = vld [vmem:[#allocation8 + $0x18] sm:$0xff]
    %v594 = vld [vmem:[%s6] sm:$0x1]
    %v596 = vlaneseq
    %v597 = vshrl.u32 %v596, 7
    %v598 = vsub.s32 0, %v597
    %v599 = vrot.slane %v594, %v598
    %v602 = vsel %vm90, %v588, 0
    %v605 = vsel %vm90, %v589, 0
    %607 = vmatprep.subr.mxu0 0.0
    %608 = vmatpush1.msra.mxu0 0.0
    %609 = vmatprep.subr.mxu0 0.0
    %610 = vmatpush1.msra.mxu0 0.0
    %611 = vmatprep.subr.mxu0 0.0
    %612 = vmatpush1.msra.mxu0 0.0
    %613 = vmatprep.subr.mxu0 0.0
    %614 = vmatpush1.msra.mxu0 0.0
    %615 = vmatprep.subr.mxu0 0.0
    %616 = vmatpush1.msra.mxu0 0.0
    %617 = vmatprep.subr.mxu0 0.0
    %618 = vmatpush1.msra.mxu0 0.0
    %619 = vmatprep.subr.mxu0 0.0
    %620 = vmatpush1.msra.mxu0 0.0
    %621 = vmatprep.subr.mxu0 0.0
    %622 = vmatpush1.msra.mxu0 0.0
    %623 = vmatprep.subr.mxu0 0.0
    %624 = vmatpush1.msra.mxu0 0.0
    %625 = vmatprep.subr.mxu0 0.0
    %626 = vmatpush1.msra.mxu0 0.0
    %627 = vmatprep.subr.mxu0 0.0
    %628 = vmatpush1.msra.mxu0 0.0
    %629 = vmatprep.subr.mxu0 0.0
    %630 = vmatpush1.msra.mxu0 0.0
    %631 = vmatprep.subr.mxu0 0.0
    %632 = vmatpush1.msra.mxu0 %v593
    %633 = vmatprep.subr.mxu0 0.0
    %634 = vmatpush1.msra.mxu0 %v592
    %635 = vmatprep.subr.mxu0 0.0
    %636 = vmatpush1.msra.mxu0 %v591
    %637 = vmatprep.subr.mxu0 0.0
    %638 = vmatpush1.msra.mxu0 %v590
    %639 = vmatprep.subr.mxu0 0.0
    %640 = vmatpush2.msra.mxu0 0.0
    %641 = vmatprep.subr.mxu0 0.0
    %642 = vmatpush2.msra.mxu0 0.0
    %643 = vmatprep.subr.mxu0 0.0
    %644 = vmatpush2.msra.mxu0 0.0
    %645 = vmatprep.subr.mxu0 0.0
    %646 = vmatpush2.msra.mxu0 0.0
    %647 = vmatprep.subr.mxu0 0.0
    %648 = vmatpush2.msra.mxu0 0.0
    %649 = vmatprep.subr.mxu0 0.0
    %650 = vmatpush2.msra.mxu0 0.0
    %651 = vmatprep.subr.mxu0 0.0
    %652 = vmatpush2.msra.mxu0 0.0
    %653 = vmatprep.subr.mxu0 0.0
    %654 = vmatpush2.msra.mxu0 0.0
    %655 = vmatprep.subr.mxu0 0.0
    %656 = vmatpush2.msra.mxu0 0.0
    %657 = vmatprep.subr.mxu0 0.0
    %658 = vmatpush2.msra.mxu0 0.0
    %659 = vmatprep.subr.mxu0 0.0
    %660 = vmatpush2.msra.mxu0 0.0
    %661 = vmatprep.subr.mxu0 0.0
    %662 = vmatpush2.msra.mxu0 0.0
    %663 = vmatprep.subr.mxu0 0.0
    %664 = vmatpush2.msra.mxu0 0.0
    %665 = vmatprep.subr.mxu0 0.0
    %666 = vmatpush2.msra.mxu0 0.0
    %667 = vmatprep.subr.mxu0 0.0
    %668 = vmatpush2.msra.mxu0 0.0
    %669 = vmatprep.subr.mxu0 0.0
    %670 = vmatpush2.msra.mxu0 0.0
    %671 = vmatprep.mubr.f32.mxu0 0.0
    %672 = vmatmul.mubr.f32.gmra.mxu0 %v602
    %v673 = vpop.f32.mrf.mxu0
    %v674 = vadd.f32 %v599, %v673
    %v675 = vpop.f32.mrf.mxu0
    %676 = vmatprep.mubr.f32.mxu0 0.0
    %677 = vmatmul.mubr.f32.gmra.mxu0 %v605
    %v678 = vpop.f32.mrf.mxu0
    %v679 = vadd.f32 %v599, %v678
    %v680 = vpop.f32.mrf.mxu0
    %681 = vdwg.mxu0
    %v682 = vmul.f32 %v205, 1.442695
    %v683 = vpow.pop %v682
    %v684 = vmul.f32 %v206, 1.442695
    %v685 = vpow.pop %v684
    %v686 = vadd.f32 %v683, 1.0
    %v687 = vadd.f32 %v685, 1.0
    %v688 = vrcp.pop %v686
    %v689 = vrcp.pop %v687
    %v690 = vmul.f32 %v197, %v688
    %v691 = vmul.f32 %v202, %v689
    %694 = vrot.lane.b32.xlu0 %v690, 64
    %v695 = vpop.permute.xlu0 %694
    %696 = vrot.lane.b32.xlu0 %v691, 64
    %v697 = vpop.permute.xlu0 %696
    %v700 = vmul.f32 %v674, %v695
    %v701 = vmul.f32 %v679, %v697
    %v702 = vadd.f32 %v700, %v85
    %v703 = vadd.f32 %v701, %v86
    %704 = vst.msk [vmem:[#allocation10] sm:$0xff] %vm90, %v702
    %705 = vst.msk [vmem:[#allocation10 + $0x8] sm:$0xff] %vm90, %v703
    %706 = vst.msk [vmem:[#allocation11] sm:$0xff] %vm90, %v588
    %707 = vst.msk [vmem:[#allocation11 + $0x8] sm:$0xff] %vm90, %v589
    // Predicated region
    $region46: #{tpu_custom_call.1} parent=1 // pred_check
      _
    $region47: #{tpu_custom_call.1} parent=1 // pred_check_branch
      %709 = sbr.rel (0) target = $region49
    $region48: #{tpu_custom_call.1} parent=1 // pred_region
      %s711 = ssub.s32 256, 256
      %712 = vsyncadd [#allocation4], %s711
      %s713 = sshll.u32 [#allocation10], 4
      %s714 = int_to_ptr.vmem [resolvable:$true] %s713
      %719 = dma.vmem_to_hbm [thread:$0]  %s714, 256, %s7, [#allocation4], 128, 128, 8
    $region49: #{tpu_custom_call.1} parent=1 // pred_fallthru
      _
    // Predicated region
    $region50: #{tpu_custom_call.1} parent=1 // pred_check
      _
    $region51: #{tpu_custom_call.1} parent=1 // pred_check_branch
      %721 = sbr.rel (0) target = $region53
    $region52: #{tpu_custom_call.1} parent=1 // pred_region
      %s723 = ssub.s32 256, 256
      %724 = vsyncadd [#allocation12], %s723
      %s725 = sshll.u32 [#allocation11], 4
      %s726 = int_to_ptr.vmem [resolvable:$true] %s725
      %731 = dma.vmem_to_hbm [thread:$0]  %s726, 256, %s8, [#allocation12], 128, 128, 8
    $region53: #{tpu_custom_call.1} parent=1 // pred_fallthru
      _
    // Predicated region
    $region54: #{tpu_custom_call.1} parent=1 // pred_check
      _
    $region55: #{tpu_custom_call.1} parent=1 // pred_check_branch
      %733 = sbr.rel (0) target = $region57
    $region56: #{tpu_custom_call.1} parent=1 // pred_region
      %734 = dma.done [#allocation4], 256
    $region57: #{tpu_custom_call.1} parent=1 // pred_fallthru
      _
    // Predicated region
    $region58: #{tpu_custom_call.1} parent=1 // pred_check
      _
    $region59: #{tpu_custom_call.1} parent=1 // pred_check_branch
      %736 = sbr.rel (0) target = $region61
    $region60: #{tpu_custom_call.1} parent=1 // pred_region
      %737 = dma.done [#allocation12], 256
    $region61: #{tpu_custom_call.1} parent=1 // pred_fallthru
      _
    %738 = vsyncpa [#allocation3], 1
    %739 = vsyncpa [#allocation6], 1
    %740 = vsyncpa [#allocation9], 1
    %741 = vsyncpa [#allocation4], 1
    %742 = vsyncpa [#allocation12], 1

// kernel: tpu_custom_call.1
$region0: #{tpu_custom_call.1}
  #allocation0 [shape = 'u32[]', space=smem, size = 0x4, offset = 0x4, fixed_abs, tag = 'smem constant byte address 0x4 - core index']
  #allocation1 [shape = 'u32[144,128]{1,0:T(1,128)}', space=vmem, size = 0x12000, scoped, tag = 'internal scratch']
  %s0 = inlined_call_operand.hbm [shape: f32[2,8,32], index: 0, kind: input, shape index: {}]
  %s1 = inlined_call_operand.hbm [shape: f32[2,1,32], index: 1, kind: input, shape index: {}]
  %s2 = inlined_call_operand.vmem [shape: f32[1,32], index: 2, kind: input, shape index: {}]
  %s3 = inlined_call_operand.hbm [shape: f32[32,96], index: 3, kind: input, shape index: {}]
  %s4 = inlined_call_operand.vmem [shape: f32[1,96], index: 4, kind: input, shape index: {}]
  %s5 = inlined_call_operand.hbm [shape: f32[32,32], index: 5, kind: input, shape index: {}]
  %s6 = inlined_call_operand.vmem [shape: f32[1,32], index: 6, kind: input, shape index: {}]
  %s7 = inlined_call_operand.hbm [shape: f32[2,8,32], index: 7, kind: output, shape index: {0}]
  %s8 = inlined_call_operand.hbm [shape: f32[2,8,32], index: 8, kind: output, shape index: {1}]
  %9 = xla_tuple %s7, %s8
  %s10 = sld [smem:[#allocation0]]
  $region62: #{tpu_custom_call.1} parent=0
    _
  %s12 = ssub.s32 1, %s10
  %s13 = scalar_select 0, %s12, %s10
  $region1: #{tpu_custom_call.1} parent=0
    #allocation2 [shape = 'u8[8192]{0}', space=vmem, size = 0x2000, scoped, tag = 'input window, operand 0, single buffered']
    #allocation3 [shape = 's32[1]{0}', space=sflag, size = 0x4, scoped, tag = 'scoped memory for tpu_custom_call.1']
    #allocation4 [shape = 's32[1]{0}', space=sflag, size = 0x4, scoped, tag = 'scoped memory for tpu_custom_call.1']
    #allocation5 [shape = 'u8[1024]{0}', space=vmem, size = 0x400, scoped, tag = 'input window, operand 1, single buffered']
    #allocation6 [shape = 's32[1]{0}', space=sflag, size = 0x4, scoped, tag = 'scoped memory for tpu_custom_call.1']
    #allocation7 [shape = 'u8[16384]{0}', space=vmem, size = 0x4000, scoped, tag = 'input window, operand 3, single buffered']
    #allocation8 [shape = 'u8[16384]{0}', space=vmem, size = 0x4000, scoped, tag = 'input window, operand 5, single buffered']
    #allocation9 [shape = 's32[1]{0}', space=sflag, size = 0x4, scoped, tag = 'scoped memory for tpu_custom_call.1']
    #allocation10 [shape = 'u8[8192]{0}', space=vmem, size = 0x2000, scoped, tag = 'output window, operand 0, single buffered']
    #allocation11 [shape = 'u8[8192]{0}', space=vmem, size = 0x2000, scoped, tag = 'output window, operand 1, single buffered']
    #allocation12 [shape = 's32[1]{0}', space=sflag, size = 0x4, scoped, tag = 'scoped memory for tpu_custom_call.1']
    %14 = vsyncpa [#allocation3], 0
    %15 = vsyncpa [#allocation6], 0
    %16 = vsyncpa [#allocation9], 0
    %17 = vsyncpa [#allocation4], 0
    %18 = vsyncpa [#allocation12], 0
    // Predicated region
    $region2: #{tpu_custom_call.1} parent=1 // pred_check
      _
    $region3: #{tpu_custom_call.1} parent=1 // pred_check_branch
      %20 = sbr.rel (0) target = $region5
    $region4: #{tpu_custom_call.1} parent=1 // pred_region
      %s22 = ssub.s32 256, 256
      %23 = vsyncadd [#allocation3], %s22
      %s24 = sshll.u32 [#allocation2], 4
      %s25 = int_to_ptr.vmem [resolvable:$true] %s24
      %30 = dma.hbm_to_vmem [thread:$0]  %s0, 256, %s25, [#allocation3], 128, 128, 8
    $region5: #{tpu_custom_call.1} parent=1 // pred_fallthru
      _
    // Predicated region
    $region6: #{tpu_custom_call.1} parent=1 // pred_check
      _
    $region7: #{tpu_custom_call.1} parent=1 // pred_check_branch
      %32 = sbr.rel (0) target = $region9
    $region8: #{tpu_custom_call.1} parent=1 // pred_region
      %s34 = ssub.s32 32, 32
      %35 = vsyncadd [#allocation6], %s34
      %s36 = sshll.u32 [#allocation5], 4
      %s37 = int_to_ptr.vmem [resolvable:$true] %s36
      %42 = dma.hbm_to_vmem [thread:$0]  %s1, 32, %s37, [#allocation6], 16, 16, 1
    $region9: #{tpu_custom_call.1} parent=1 // pred_fallthru
      _
    // Predicated region
    $region10: #{tpu_custom_call.1} parent=1 // pred_check
      _
    $region11: #{tpu_custom_call.1} parent=1 // pred_check_branch
      %44 = sbr.rel (0) target = $region13
    $region12: #{tpu_custom_call.1} parent=1 // pred_region
      _
    $region13: #{tpu_custom_call.1} parent=1 // pred_fallthru
      _
    // Predicated region
    $region14: #{tpu_custom_call.1} parent=1 // pred_check
      _
    $region15: #{tpu_custom_call.1} parent=1 // pred_check_branch
      %46 = sbr.rel (0) target = $region17
    $region16: #{tpu_custom_call.1} parent=1 // pred_region
      %s48 = ssub.s32 512, 512
      %49 = vsyncadd [#allocation6], %s48
      %s50 = sshll.u32 [#allocation7], 4
      %s51 = int_to_ptr.vmem [resolvable:$true] %s50
      %56 = dma.hbm_to_vmem [thread:$0]  %s3, 512, %s51, [#allocation6], 128, 128, 8
    $region17: #{tpu_custom_call.1} parent=1 // pred_fallthru
      _
    // Predicated region
    $region18: #{tpu_custom_call.1} parent=1 // pred_check
      _
    $region19: #{tpu_custom_call.1} parent=1 // pred_check_branch
      %58 = sbr.rel (0) target = $region21
    $region20: #{tpu_custom_call.1} parent=1 // pred_region
      _
    $region21: #{tpu_custom_call.1} parent=1 // pred_fallthru
      _
    // Predicated region
    $region22: #{tpu_custom_call.1} parent=1 // pred_check
      _
    $region23: #{tpu_custom_call.1} parent=1 // pred_check_branch
      %60 = sbr.rel (0) target = $region25
    $region24: #{tpu_custom_call.1} parent=1 // pred_region
      %s62 = ssub.s32 512, 512
      %63 = vsyncadd [#allocation9], %s62
      %s64 = sshll.u32 [#allocation8], 4
      %s65 = int_to_ptr.vmem [resolvable:$true] %s64
      %70 = dma.hbm_to_vmem [thread:$0]  %s5, 512, %s65, [#allocation9], 128, 128, 8
    $region25: #{tpu_custom_call.1} parent=1 // pred_fallthru
      _
    // Predicated region
    $region26: #{tpu_custom_call.1} parent=1 // pred_check
      _
    $region27: #{tpu_custom_call.1} parent=1 // pred_check_branch
      %72 = sbr.rel (0) target = $region29
    $region28: #{tpu_custom_call.1} parent=1 // pred_region
      _
    $region29: #{tpu_custom_call.1} parent=1 // pred_fallthru
      _
    // Predicated region
    $region30: #{tpu_custom_call.1} parent=1 // pred_check
      _
    $region31: #{tpu_custom_call.1} parent=1 // pred_check_branch
      %74 = sbr.rel (0) target = $region33
    $region32: #{tpu_custom_call.1} parent=1 // pred_region
      %75 = dma.done [#allocation3], 256
    $region33: #{tpu_custom_call.1} parent=1 // pred_fallthru
      _
    // Predicated region
    $region34: #{tpu_custom_call.1} parent=1 // pred_check
      _
    $region35: #{tpu_custom_call.1} parent=1 // pred_check_branch
      %77 = sbr.rel (0) target = $region37
    $region36: #{tpu_custom_call.1} parent=1 // pred_region
      %78 = dma.done [#allocation6], 32
    $region37: #{tpu_custom_call.1} parent=1 // pred_fallthru
      _
    // Predicated region
    $region38: #{tpu_custom_call.1} parent=1 // pred_check
      _
    $region39: #{tpu_custom_call.1} parent=1 // pred_check_branch
      %80 = sbr.rel (0) target = $region41
    $region40: #{tpu_custom_call.1} parent=1 // pred_region
      %81 = dma.done [#allocation6], 512
    $region41: #{tpu_custom_call.1} parent=1 // pred_fallthru
      _
    // Predicated region
    $region42: #{tpu_custom_call.1} parent=1 // pred_check
      _
    $region43: #{tpu_custom_call.1} parent=1 // pred_check_branch
      %83 = sbr.rel (0) target = $region45
    $region44: #{tpu_custom_call.1} parent=1 // pred_region
      %84 = dma.done [#allocation9], 512
    $region45: #{tpu_custom_call.1} parent=1 // pred_fallthru
      _
    %v85 = vld [vmem:[#allocation2] sm:$0xff]
    %v86 = vld [vmem:[#allocation2 + $0x8] sm:$0xff]
    %v87 = vld [vmem:[%s2] sm:$0x1]
    %v88 = vmul.f32 %v85, %v85
    %v89 = vmul.f32 %v86, %v86
    %vm90 = vcmask 261120
    %v91 = vsel %vm90, %v88, 0.0
    %92 = vadd.xlane.f32.xlu0 %v91
    %v93 = vpop.xlane.xlu0 %92
    %v94 = vsel %vm90, %v89, 0.0
    %95 = vadd.xlane.f32.xlu0 %v94
    %v96 = vpop.xlane.xlu0 %95
    %v97 = vmul.f32 %v93, 0.03125
    %v98 = vmul.f32 %v96, 0.03125
    %v99 = vadd.f32 %v97, 1e-06
    %v100 = vadd.f32 %v98, 1e-06
    %v101 = vrsqrt.pop %v99
    %v102 = vrsqrt.pop %v100
    %v103 = vmul.f32 %v85, %v101
    %v104 = vmul.f32 %v86, %v102
    %v106 = vlaneseq
    %v107 = vshrl.u32 %v106, 7
    %v108 = vsub.s32 0, %v107
    %v109 = vrot.slane %v87, %v108
    %v111 = vmul.f32 %v103, %v109
    %v112 = vmul.f32 %v104, %v109
    %v113 = vld [vmem:[#allocation7] sm:$0xff]
    %v114 = vld [vmem:[#allocation7 + $0x8] sm:$0xff]
    %v115 = vld [vmem:[#allocation7 + $0x10] sm:$0xff]
    %v116 = vld [vmem:[#allocation7 + $0x18] sm:$0xff]
    %v117 = vld [vmem:[%s4] sm:$0x1]
    %v119 = vlaneseq
    %v120 = vshrl.u32 %v119, 7
    %v121 = vsub.s32 0, %v120
    %v122 = vrot.slane %v117, %v121
    %v125 = vsel %vm90, %v111, 0
    %v128 = vsel %vm90, %v112, 0
    %130 = vmatprep.subr.mxu0 0.0
    %131 = vmatpush1.msra.mxu0 0.0
    %132 = vmatprep.subr.mxu0 0.0
    %133 = vmatpush1.msra.mxu0 0.0
    %134 = vmatprep.subr.mxu0 0.0
    %135 = vmatpush1.msra.mxu0 0.0
    %136 = vmatprep.subr.mxu0 0.0
    %137 = vmatpush1.msra.mxu0 0.0
    %138 = vmatprep.subr.mxu0 0.0
    %139 = vmatpush1.msra.mxu0 0.0
    %140 = vmatprep.subr.mxu0 0.0
    %141 = vmatpush1.msra.mxu0 0.0
    %142 = vmatprep.subr.mxu0 0.0
    %143 = vmatpush1.msra.mxu0 0.0
    %144 = vmatprep.subr.mxu0 0.0
    %145 = vmatpush1.msra.mxu0 0.0
    %146 = vmatprep.subr.mxu0 0.0
    %147 = vmatpush1.msra.mxu0 0.0
    %148 = vmatprep.subr.mxu0 0.0
    %149 = vmatpush1.msra.mxu0 0.0
    %150 = vmatprep.subr.mxu0 0.0
    %151 = vmatpush1.msra.mxu0 0.0
    %152 = vmatprep.subr.mxu0 0.0
    %153 = vmatpush1.msra.mxu0 0.0
    %154 = vmatprep.subr.mxu0 0.0
    %155 = vmatpush1.msra.mxu0 %v116
    %156 = vmatprep.subr.mxu0 0.0
    %157 = vmatpush1.msra.mxu0 %v115
    %158 = vmatprep.subr.mxu0 0.0
    %159 = vmatpush1.msra.mxu0 %v114
    %160 = vmatprep.subr.mxu0 0.0
    %161 = vmatpush1.msra.mxu0 %v113
    %162 = vmatprep.subr.mxu0 0.0
    %163 = vmatpush2.msra.mxu0 0.0
    %164 = vmatprep.subr.mxu0 0.0
    %165 = vmatpush2.msra.mxu0 0.0
    %166 = vmatprep.subr.mxu0 0.0
    %167 = vmatpush2.msra.mxu0 0.0
    %168 = vmatprep.subr.mxu0 0.0
    %169 = vmatpush2.msra.mxu0 0.0
    %170 = vmatprep.subr.mxu0 0.0
    %171 = vmatpush2.msra.mxu0 0.0
    %172 = vmatprep.subr.mxu0 0.0
    %173 = vmatpush2.msra.mxu0 0.0
    %174 = vmatprep.subr.mxu0 0.0
    %175 = vmatpush2.msra.mxu0 0.0
    %176 = vmatprep.subr.mxu0 0.0
    %177 = vmatpush2.msra.mxu0 0.0
    %178 = vmatprep.subr.mxu0 0.0
    %179 = vmatpush2.msra.mxu0 0.0
    %180 = vmatprep.subr.mxu0 0.0
    %181 = vmatpush2.msra.mxu0 0.0
    %182 = vmatprep.subr.mxu0 0.0
    %183 = vmatpush2.msra.mxu0 0.0
    %184 = vmatprep.subr.mxu0 0.0
    %185 = vmatpush2.msra.mxu0 0.0
    %186 = vmatprep.subr.mxu0 0.0
    %187 = vmatpush2.msra.mxu0 0.0
    %188 = vmatprep.subr.mxu0 0.0
    %189 = vmatpush2.msra.mxu0 0.0
    %190 = vmatprep.subr.mxu0 0.0
    %191 = vmatpush2.msra.mxu0 0.0
    %192 = vmatprep.subr.mxu0 0.0
    %193 = vmatpush2.msra.mxu0 0.0
    %194 = vmatprep.mubr.f32.mxu0 0.0
    %195 = vmatmul.mubr.f32.gmra.mxu0 %v125
    %v196 = vpop.f32.mrf.mxu0
    %v197 = vadd.f32 %v122, %v196
    %v198 = vpop.f32.mrf.mxu0
    %199 = vmatprep.mubr.f32.mxu0 0.0
    %200 = vmatmul.mubr.f32.gmra.mxu0 %v128
    %v201 = vpop.f32.mrf.mxu0
    %v202 = vadd.f32 %v122, %v201
    %v203 = vpop.f32.mrf.mxu0
    %204 = vdwg.mxu0
    %v205 = vsub.f32 0.0, %v197
    %v206 = vsub.f32 0.0, %v202
    %v207 = vmax.f32 %v205, 0.0
    %v208 = vmax.f32 %v206, 0.0
    %v209 = vand.u32 2147483647, %v205
    %v210 = vand.u32 2147483647, %v206
    %v211 = vsub.f32 0.0, %v209
    %v212 = vsub.f32 0.0, %v210
    %v213 = vmul.f32 %v211, 1.442695
    %v214 = vpow.pop %v213
    %v215 = vmul.f32 %v212, 1.442695
    %v216 = vpow.pop %v215
    %v217 = vadd.f32 %v214, 1.0
    %v218 = vadd.f32 %v216, 1.0
    %v219 = vlog2.pop %v217
    %v220 = vmul.f32 %v219, 0.6931472
    %v221 = vlog2.pop %v218
    %v222 = vmul.f32 %v221, 0.6931472
    %v223 = vadd.f32 %v207, %v220
    %v224 = vadd.f32 %v208, %v222
    %v225 = vsub.f32 0.0, %v223
    %v226 = vsub.f32 0.0, %v224
    %v227 = vsub.f32 %v225, %v197
    %v228 = vsub.f32 %v226, %v202
    %231 = vrot.lane.b32.xlu0 %v225, 96
    %v232 = vpop.permute.xlu0 %231
    %233 = vrot.lane.b32.xlu0 %v226, 96
    %v234 = vpop.permute.xlu0 %233
    %v237 = vadd.f32 %v225, %v232
    %v238 = vadd.f32 %v226, %v234
    %v239 = vlaneseq
    %v240 = vshrl.u32 %v239, 7
    %v241 = vlaneseq
    %v242 = vand.u32 %v241, 127
    %vm243 = vcmp.ge.s32.totalorder %v240, %v242
    %v244 = vsel %vm243, 1, 0
    %v245 = vcvt.s32.f32 %v244
    %247 = vrot.lane.b32.xlu0 %v227, 96
    %v248 = vpop.permute.xlu0 %247
    %vm250 = vcmask 64512
    %v252 = vsel %vm250, %v245, 0
    %254 = vmatprep.subr.mxu0 0.0
    %255 = vmatpush1.msra.mxu0 0.0
    %256 = vmatprep.subr.mxu0 0.0
    %257 = vmatpush1.msra.mxu0 0.0
    %258 = vmatprep.subr.mxu0 0.0
    %259 = vmatpush1.msra.mxu0 0.0
    %260 = vmatprep.subr.mxu0 0.0
    %261 = vmatpush1.msra.mxu0 0.0
    %262 = vmatprep.subr.mxu0 0.0
    %263 = vmatpush1.msra.mxu0 0.0
    %264 = vmatprep.subr.mxu0 0.0
    %265 = vmatpush1.msra.mxu0 0.0
    %266 = vmatprep.subr.mxu0 0.0
    %267 = vmatpush1.msra.mxu0 0.0
    %268 = vmatprep.subr.mxu0 0.0
    %269 = vmatpush1.msra.mxu0 0.0
    %270 = vmatprep.subr.mxu0 0.0
    %271 = vmatpush1.msra.mxu0 0.0
    %272 = vmatprep.subr.mxu0 0.0
    %273 = vmatpush1.msra.mxu0 0.0
    %274 = vmatprep.subr.mxu0 0.0
    %275 = vmatpush1.msra.mxu0 0.0
    %276 = vmatprep.subr.mxu0 0.0
    %277 = vmatpush1.msra.mxu0 0.0
    %278 = vmatprep.subr.mxu0 0.0
    %279 = vmatpush1.msra.mxu0 0.0
    %280 = vmatprep.subr.mxu0 0.0
    %281 = vmatpush1.msra.mxu0 0.0
    %282 = vmatprep.subr.mxu0 0.0
    %283 = vmatpush1.msra.mxu0 0.0
    %284 = vmatprep.subr.mxu0 0.0
    %285 = vmatpush1.msra.mxu0 %v248
    %286 = vmatprep.subr.mxu0 0.0
    %287 = vmatpush2.msra.mxu0 0.0
    %288 = vmatprep.subr.mxu0 0.0
    %289 = vmatpush2.msra.mxu0 0.0
    %290 = vmatprep.subr.mxu0 0.0
    %291 = vmatpush2.msra.mxu0 0.0
    %292 = vmatprep.subr.mxu0 0.0
    %293 = vmatpush2.msra.mxu0 0.0
    %294 = vmatprep.subr.mxu0 0.0
    %295 = vmatpush2.msra.mxu0 0.0
    %296 = vmatprep.subr.mxu0 0.0
    %297 = vmatpush2.msra.mxu0 0.0
    %298 = vmatprep.subr.mxu0 0.0
    %299 = vmatpush2.msra.mxu0 0.0
    %300 = vmatprep.subr.mxu0 0.0
    %301 = vmatpush2.msra.mxu0 0.0
    %302 = vmatprep.subr.mxu0 0.0
    %303 = vmatpush2.msra.mxu0 0.0
    %304 = vmatprep.subr.mxu0 0.0
    %305 = vmatpush2.msra.mxu0 0.0
    %306 = vmatprep.subr.mxu0 0.0
    %307 = vmatpush2.msra.mxu0 0.0
    %308 = vmatprep.subr.mxu0 0.0
    %309 = vmatpush2.msra.mxu0 0.0
    %310 = vmatprep.subr.mxu0 0.0
    %311 = vmatpush2.msra.mxu0 0.0
    %312 = vmatprep.subr.mxu0 0.0
    %313 = vmatpush2.msra.mxu0 0.0
    %314 = vmatprep.subr.mxu0 0.0
    %315 = vmatpush2.msra.mxu0 0.0
    %316 = vmatprep.subr.mxu0 0.0
    %317 = vmatpush2.msra.mxu0 0.0
    %318 = vmatprep.mubr.f32.mxu0 0.0
    %319 = vmatmul.mubr.f32.gmra.mxu0 %v252
    %v320 = vpop.f32.mrf.mxu0
    %v321 = vadd.f32 0.0, %v320
    %v322 = vpop.f32.mrf.mxu0
    %323 = vdwg.mxu0
    %325 = vrot.lane.b32.xlu0 %v228, 96
    %v326 = vpop.permute.xlu0 %325
    %328 = vmatprep.subr.mxu0 0.0
    %329 = vmatpush1.msra.mxu0 0.0
    %330 = vmatprep.subr.mxu0 0.0
    %331 = vmatpush1.msra.mxu0 0.0
    %332 = vmatprep.subr.mxu0 0.0
    %333 = vmatpush1.msra.mxu0 0.0
    %334 = vmatprep.subr.mxu0 0.0
    %335 = vmatpush1.msra.mxu0 0.0
    %336 = vmatprep.subr.mxu0 0.0
    %337 = vmatpush1.msra.mxu0 0.0
    %338 = vmatprep.subr.mxu0 0.0
    %339 = vmatpush1.msra.mxu0 0.0
    %340 = vmatprep.subr.mxu0 0.0
    %341 = vmatpush1.msra.mxu0 0.0
    %342 = vmatprep.subr.mxu0 0.0
    %343 = vmatpush1.msra.mxu0 0.0
    %344 = vmatprep.subr.mxu0 0.0
    %345 = vmatpush1.msra.mxu0 0.0
    %346 = vmatprep.subr.mxu0 0.0
    %347 = vmatpush1.msra.mxu0 0.0
    %348 = vmatprep.subr.mxu0 0.0
    %349 = vmatpush1.msra.mxu0 0.0
    %350 = vmatprep.subr.mxu0 0.0
    %351 = vmatpush1.msra.mxu0 0.0
    %352 = vmatprep.subr.mxu0 0.0
    %353 = vmatpush1.msra.mxu0 0.0
    %354 = vmatprep.subr.mxu0 0.0
    %355 = vmatpush1.msra.mxu0 0.0
    %356 = vmatprep.subr.mxu0 0.0
    %357 = vmatpush1.msra.mxu0 0.0
    %358 = vmatprep.subr.mxu0 0.0
    %359 = vmatpush1.msra.mxu0 %v326
    %360 = vmatprep.subr.mxu0 0.0
    %361 = vmatpush2.msra.mxu0 0.0
    %362 = vmatprep.subr.mxu0 0.0
    %363 = vmatpush2.msra.mxu0 0.0
    %364 = vmatprep.subr.mxu0 0.0
    %365 = vmatpush2.msra.mxu0 0.0
    %366 = vmatprep.subr.mxu0 0.0
    %367 = vmatpush2.msra.mxu0 0.0
    %368 = vmatprep.subr.mxu0 0.0
    %369 = vmatpush2.msra.mxu0 0.0
    %370 = vmatprep.subr.mxu0 0.0
    %371 = vmatpush2.msra.mxu0 0.0
    %372 = vmatprep.subr.mxu0 0.0
    %373 = vmatpush2.msra.mxu0 0.0
    %374 = vmatprep.subr.mxu0 0.0
    %375 = vmatpush2.msra.mxu0 0.0
    %376 = vmatprep.subr.mxu0 0.0
    %377 = vmatpush2.msra.mxu0 0.0
    %378 = vmatprep.subr.mxu0 0.0
    %379 = vmatpush2.msra.mxu0 0.0
    %380 = vmatprep.subr.mxu0 0.0
    %381 = vmatpush2.msra.mxu0 0.0
    %382 = vmatprep.subr.mxu0 0.0
    %383 = vmatpush2.msra.mxu0 0.0
    %384 = vmatprep.subr.mxu0 0.0
    %385 = vmatpush2.msra.mxu0 0.0
    %386 = vmatprep.subr.mxu0 0.0
    %387 = vmatpush2.msra.mxu0 0.0
    %388 = vmatprep.subr.mxu0 0.0
    %389 = vmatpush2.msra.mxu0 0.0
    %390 = vmatprep.subr.mxu0 0.0
    %391 = vmatpush2.msra.mxu0 0.0
    %392 = vmatprep.mubr.f32.mxu0 0.0
    %393 = vmatmul.mubr.f32.gmra.mxu0 %v252
    %v394 = vpop.f32.mrf.mxu0
    %v395 = vadd.f32 0.0, %v394
    %v396 = vpop.f32.mrf.mxu0
    %397 = vdwg.mxu0
    %v398 = vsub.f32 %v237, %v321
    %v399 = vsub.f32 %v238, %v395
    %v400 = vsel %vm90, %v398, -inf
    %v401 = vrot.slane %v400, 4
    %v402 = vmax.f32 %v400, %v401
    %v403 = vrot.slane %v402, 2
    %v404 = vmax.f32 %v402, %v403
    %v405 = vrot.slane %v404, 1
    %v406 = vmax.f32 %v404, %v405
    %v407 = vsel %vm90, %v399, -inf
    %v408 = vrot.slane %v407, 4
    %v409 = vmax.f32 %v407, %v408
    %v410 = vrot.slane %v409, 2
    %v411 = vmax.f32 %v409, %v410
    %v412 = vrot.slane %v411, 1
    %v413 = vmax.f32 %v411, %v412
    %v414 = vsub.f32 %v398, %v406
    %v415 = vsub.f32 %v399, %v413
    %v416 = vmul.f32 %v414, 1.442695
    %v417 = vpow.pop %v416
    %v418 = vmul.f32 %v415, 1.442695
    %v419 = vpow.pop %v418
    %420 = vmatprep.subr.mxu0 0.0
    %421 = vmatpush1.msra.mxu0 0.0
    %422 = vmatprep.subr.mxu0 0.0
    %423 = vmatpush1.msra.mxu0 0.0
    %424 = vmatprep.subr.mxu0 0.0
    %425 = vmatpush1.msra.mxu0 0.0
    %426 = vmatprep.subr.mxu0 0.0
    %427 = vmatpush1.msra.mxu0 0.0
    %428 = vmatprep.subr.mxu0 0.0
    %429 = vmatpush1.msra.mxu0 0.0
    %430 = vmatprep.subr.mxu0 0.0
    %431 = vmatpush1.msra.mxu0 0.0
    %432 = vmatprep.subr.mxu0 0.0
    %433 = vmatpush1.msra.mxu0 0.0
    %434 = vmatprep.subr.mxu0 0.0
    %435 = vmatpush1.msra.mxu0 0.0
    %436 = vmatprep.subr.mxu0 0.0
    %437 = vmatpush1.msra.mxu0 0.0
    %438 = vmatprep.subr.mxu0 0.0
    %439 = vmatpush1.msra.mxu0 0.0
    %440 = vmatprep.subr.mxu0 0.0
    %441 = vmatpush1.msra.mxu0 0.0
    %442 = vmatprep.subr.mxu0 0.0
    %443 = vmatpush1.msra.mxu0 0.0
    %444 = vmatprep.subr.mxu0 0.0
    %445 = vmatpush1.msra.mxu0 0.0
    %446 = vmatprep.subr.mxu0 0.0
    %447 = vmatpush1.msra.mxu0 0.0
    %448 = vmatprep.subr.mxu0 0.0
    %449 = vmatpush1.msra.mxu0 0.0
    %450 = vmatprep.subr.mxu0 0.0
    %451 = vmatpush1.msra.mxu0 %v417
    %452 = vmatprep.subr.mxu0 0.0
    %453 = vmatpush2.msra.mxu0 0.0
    %454 = vmatprep.subr.mxu0 0.0
    %455 = vmatpush2.msra.mxu0 0.0
    %456 = vmatprep.subr.mxu0 0.0
    %457 = vmatpush2.msra.mxu0 0.0
    %458 = vmatprep.subr.mxu0 0.0
    %459 = vmatpush2.msra.mxu0 0.0
    %460 = vmatprep.subr.mxu0 0.0
    %461 = vmatpush2.msra.mxu0 0.0
    %462 = vmatprep.subr.mxu0 0.0
    %463 = vmatpush2.msra.mxu0 0.0
    %464 = vmatprep.subr.mxu0 0.0
    %465 = vmatpush2.msra.mxu0 0.0
    %466 = vmatprep.subr.mxu0 0.0
    %467 = vmatpush2.msra.mxu0 0.0
    %468 = vmatprep.subr.mxu0 0.0
    %469 = vmatpush2.msra.mxu0 0.0
    %470 = vmatprep.subr.mxu0 0.0
    %471 = vmatpush2.msra.mxu0 0.0
    %472 = vmatprep.subr.mxu0 0.0
    %473 = vmatpush2.msra.mxu0 0.0
    %474 = vmatprep.subr.mxu0 0.0
    %475 = vmatpush2.msra.mxu0 0.0
    %476 = vmatprep.subr.mxu0 0.0
    %477 = vmatpush2.msra.mxu0 0.0
    %478 = vmatprep.subr.mxu0 0.0
    %479 = vmatpush2.msra.mxu0 0.0
    %480 = vmatprep.subr.mxu0 0.0
    %481 = vmatpush2.msra.mxu0 0.0
    %482 = vmatprep.subr.mxu0 0.0
    %483 = vmatpush2.msra.mxu0 0.0
    %484 = vmatprep.mubr.f32.mxu0 0.0
    %485 = vmatmul.mubr.f32.gmra.mxu0 %v252
    %v486 = vpop.f32.mrf.mxu0
    %v487 = vadd.f32 0.0, %v486
    %v488 = vpop.f32.mrf.mxu0
    %489 = vdwg.mxu0
    %490 = vmatprep.subr.mxu0 0.0
    %491 = vmatpush1.msra.mxu0 0.0
    %492 = vmatprep.subr.mxu0 0.0
    %493 = vmatpush1.msra.mxu0 0.0
    %494 = vmatprep.subr.mxu0 0.0
    %495 = vmatpush1.msra.mxu0 0.0
    %496 = vmatprep.subr.mxu0 0.0
    %497 = vmatpush1.msra.mxu0 0.0
    %498 = vmatprep.subr.mxu0 0.0
    %499 = vmatpush1.msra.mxu0 0.0
    %500 = vmatprep.subr.mxu0 0.0
    %501 = vmatpush1.msra.mxu0 0.0
    %502 = vmatprep.subr.mxu0 0.0
    %503 = vmatpush1.msra.mxu0 0.0
    %504 = vmatprep.subr.mxu0 0.0
    %505 = vmatpush1.msra.mxu0 0.0
    %506 = vmatprep.subr.mxu0 0.0
    %507 = vmatpush1.msra.mxu0 0.0
    %508 = vmatprep.subr.mxu0 0.0
    %509 = vmatpush1.msra.mxu0 0.0
    %510 = vmatprep.subr.mxu0 0.0
    %511 = vmatpush1.msra.mxu0 0.0
    %512 = vmatprep.subr.mxu0 0.0
    %513 = vmatpush1.msra.mxu0 0.0
    %514 = vmatprep.subr.mxu0 0.0
    %515 = vmatpush1.msra.mxu0 0.0
    %516 = vmatprep.subr.mxu0 0.0
    %517 = vmatpush1.msra.mxu0 0.0
    %518 = vmatprep.subr.mxu0 0.0
    %519 = vmatpush1.msra.mxu0 0.0
    %520 = vmatprep.subr.mxu0 0.0
    %521 = vmatpush1.msra.mxu0 %v419
    %522 = vmatprep.subr.mxu0 0.0
    %523 = vmatpush2.msra.mxu0 0.0
    %524 = vmatprep.subr.mxu0 0.0
    %525 = vmatpush2.msra.mxu0 0.0
    %526 = vmatprep.subr.mxu0 0.0
    %527 = vmatpush2.msra.mxu0 0.0
    %528 = vmatprep.subr.mxu0 0.0
    %529 = vmatpush2.msra.mxu0 0.0
    %530 = vmatprep.subr.mxu0 0.0
    %531 = vmatpush2.msra.mxu0 0.0
    %532 = vmatprep.subr.mxu0 0.0
    %533 = vmatpush2.msra.mxu0 0.0
    %534 = vmatprep.subr.mxu0 0.0
    %535 = vmatpush2.msra.mxu0 0.0
    %536 = vmatprep.subr.mxu0 0.0
    %537 = vmatpush2.msra.mxu0 0.0
    %538 = vmatprep.subr.mxu0 0.0
    %539 = vmatpush2.msra.mxu0 0.0
    %540 = vmatprep.subr.mxu0 0.0
    %541 = vmatpush2.msra.mxu0 0.0
    %542 = vmatprep.subr.mxu0 0.0
    %543 = vmatpush2.msra.mxu0 0.0
    %544 = vmatprep.subr.mxu0 0.0
    %545 = vmatpush2.msra.mxu0 0.0
    %546 = vmatprep.subr.mxu0 0.0
    %547 = vmatpush2.msra.mxu0 0.0
    %548 = vmatprep.subr.mxu0 0.0
    %549 = vmatpush2.msra.mxu0 0.0
    %550 = vmatprep.subr.mxu0 0.0
    %551 = vmatpush2.msra.mxu0 0.0
    %552 = vmatprep.subr.mxu0 0.0
    %553 = vmatpush2.msra.mxu0 0.0
    %554 = vmatprep.mubr.f32.mxu0 0.0
    %555 = vmatmul.mubr.f32.gmra.mxu0 %v252
    %v556 = vpop.f32.mrf.mxu0
    %v557 = vadd.f32 0.0, %v556
    %v558 = vpop.f32.mrf.mxu0
    %559 = vdwg.mxu0
    %v560 = vmul.f32 %v321, 1.442695
    %v561 = vpow.pop %v560
    %v562 = vmul.f32 %v395, 1.442695
    %v563 = vpow.pop %v562
    %v564 = vmul.f32 %v406, 1.442695
    %v565 = vpow.pop %v564
    %v566 = vmul.f32 %v413, 1.442695
    %v567 = vpow.pop %v566
    %v568 = vmul.f32 %v565, %v561
    %v569 = vmul.f32 %v567, %v563
    %v570 = vmul.f32 %v487, %v568
    %v571 = vmul.f32 %v557, %v569
    %v572 = vld [vmem:[#allocation5] sm:$0x1]
    %v573 = vld [vmem:[#allocation5 + $0x1] sm:$0x1]
    %v576 = vlaneseq
    %v577 = vshrl.u32 %v576, 7
    %v578 = vsub.s32 0, %v577
    %v579 = vrot.slane %v572, %v578
    %v580 = vlaneseq
    %v581 = vshrl.u32 %v580, 7
    %v582 = vsub.s32 0, %v581
    %v583 = vrot.slane %v573, %v582
    %v586 = vmul.f32 %v561, %v579
    %v587 = vmul.f32 %v563, %v583
    %v588 = vadd.f32 %v570, %v586
    %v589 = vadd.f32 %v571, %v587
    %v590 = vld [vmem:[#allocation8] sm:$0xff]
    %v591 = vld [vmem:[#allocation8 + $0x8] sm:$0xff]
    %v592 = vld [vmem:[#allocation8 + $0x10] sm:$0xff]
    %v593 = vld [vmem:[#allocation8 + $0x18] sm:$0xff]
    %v594 = vld [vmem:[%s6] sm:$0x1]
    %v596 = vlaneseq
    %v597 = vshrl.u32 %v596, 7
    %v598 = vsub.s32 0, %v597
    %v599 = vrot.slane %v594, %v598
    %v602 = vsel %vm90, %v588, 0
    %v605 = vsel %vm90, %v589, 0
    %607 = vmatprep.subr.mxu0 0.0
    %608 = vmatpush1.msra.mxu0 0.0
    %609 = vmatprep.subr.mxu0 0.0
    %610 = vmatpush1.msra.mxu0 0.0
    %611 = vmatprep.subr.mxu0 0.0
    %612 = vmatpush1.msra.mxu0 0.0
    %613 = vmatprep.subr.mxu0 0.0
    %614 = vmatpush1.msra.mxu0 0.0
    %615 = vmatprep.subr.mxu0 0.0
    %616 = vmatpush1.msra.mxu0 0.0
    %617 = vmatprep.subr.mxu0 0.0
    %618 = vmatpush1.msra.mxu0 0.0
    %619 = vmatprep.subr.mxu0 0.0
    %620 = vmatpush1.msra.mxu0 0.0
    %621 = vmatprep.subr.mxu0 0.0
    %622 = vmatpush1.msra.mxu0 0.0
    %623 = vmatprep.subr.mxu0 0.0
    %624 = vmatpush1.msra.mxu0 0.0
    %625 = vmatprep.subr.mxu0 0.0
    %626 = vmatpush1.msra.mxu0 0.0
    %627 = vmatprep.subr.mxu0 0.0
    %628 = vmatpush1.msra.mxu0 0.0
    %629 = vmatprep.subr.mxu0 0.0
    %630 = vmatpush1.msra.mxu0 0.0
    %631 = vmatprep.subr.mxu0 0.0
    %632 = vmatpush1.msra.mxu0 %v593
    %633 = vmatprep.subr.mxu0 0.0
    %634 = vmatpush1.msra.mxu0 %v592
    %635 = vmatprep.subr.mxu0 0.0
    %636 = vmatpush1.msra.mxu0 %v591
    %637 = vmatprep.subr.mxu0 0.0
    %638 = vmatpush1.msra.mxu0 %v590
    %639 = vmatprep.subr.mxu0 0.0
    %640 = vmatpush2.msra.mxu0 0.0
    %641 = vmatprep.subr.mxu0 0.0
    %642 = vmatpush2.msra.mxu0 0.0
    %643 = vmatprep.subr.mxu0 0.0
    %644 = vmatpush2.msra.mxu0 0.0
    %645 = vmatprep.subr.mxu0 0.0
    %646 = vmatpush2.msra.mxu0 0.0
    %647 = vmatprep.subr.mxu0 0.0
    %648 = vmatpush2.msra.mxu0 0.0
    %649 = vmatprep.subr.mxu0 0.0
    %650 = vmatpush2.msra.mxu0 0.0
    %651 = vmatprep.subr.mxu0 0.0
    %652 = vmatpush2.msra.mxu0 0.0
    %653 = vmatprep.subr.mxu0 0.0
    %654 = vmatpush2.msra.mxu0 0.0
    %655 = vmatprep.subr.mxu0 0.0
    %656 = vmatpush2.msra.mxu0 0.0
    %657 = vmatprep.subr.mxu0 0.0
    %658 = vmatpush2.msra.mxu0 0.0
    %659 = vmatprep.subr.mxu0 0.0
    %660 = vmatpush2.msra.mxu0 0.0
    %661 = vmatprep.subr.mxu0 0.0
    %662 = vmatpush2.msra.mxu0 0.0
    %663 = vmatprep.subr.mxu0 0.0
    %664 = vmatpush2.msra.mxu0 0.0
    %665 = vmatprep.subr.mxu0 0.0
    %666 = vmatpush2.msra.mxu0 0.0
    %667 = vmatprep.subr.mxu0 0.0
    %668 = vmatpush2.msra.mxu0 0.0
    %669 = vmatprep.subr.mxu0 0.0
    %670 = vmatpush2.msra.mxu0 0.0
    %671 = vmatprep.mubr.f32.mxu0 0.0
    %672 = vmatmul.mubr.f32.gmra.mxu0 %v602
    %v673 = vpop.f32.mrf.mxu0
    %v674 = vadd.f32 %v599, %v673
    %v675 = vpop.f32.mrf.mxu0
    %676 = vmatprep.mubr.f32.mxu0 0.0
    %677 = vmatmul.mubr.f32.gmra.mxu0 %v605
    %v678 = vpop.f32.mrf.mxu0
    %v679 = vadd.f32 %v599, %v678
    %v680 = vpop.f32.mrf.mxu0
    %681 = vdwg.mxu0
    %v682 = vmul.f32 %v205, 1.442695
    %v683 = vpow.pop %v682
    %v684 = vmul.f32 %v206, 1.442695
    %v685 = vpow.pop %v684
    %v686 = vadd.f32 %v683, 1.0
    %v687 = vadd.f32 %v685, 1.0
    %v688 = vrcp.pop %v686
    %v689 = vrcp.pop %v687
    %v690 = vmul.f32 %v197, %v688
    %v691 = vmul.f32 %v202, %v689
    %694 = vrot.lane.b32.xlu0 %v690, 64
    %v695 = vpop.permute.xlu0 %694
    %696 = vrot.lane.b32.xlu0 %v691, 64
    %v697 = vpop.permute.xlu0 %696
    %v700 = vmul.f32 %v674, %v695
    %v701 = vmul.f32 %v679, %v697
    %v702 = vadd.f32 %v700, %v85
    %v703 = vadd.f32 %v701, %v86
    %704 = vst.msk [vmem:[#allocation10] sm:$0xff] %vm90, %v702
    %705 = vst.msk [vmem:[#allocation10 + $0x8] sm:$0xff] %vm90, %v703
    %706 = vst.msk [vmem:[#allocation11] sm:$0xff] %vm90, %v588
    %707 = vst.msk [vmem:[#allocation11 + $0x8] sm:$0xff] %vm90, %v589
    // Predicated region
    $region46: #{tpu_custom_call.1} parent=1 // pred_check
      _
    $region47: #{tpu_custom_call.1} parent=1 // pred_check_branch
      %709 = sbr.rel (0) target = $region49
    $region48: #{tpu_custom_call.1} parent=1 // pred_region
      %s711 = ssub.s32 256, 256
      %712 = vsyncadd [#allocation4], %s711
      %s713 = sshll.u32 [#allocation10], 4
      %s714 = int_to_ptr.vmem [resolvable:$true] %s713
      %719 = dma.vmem_to_hbm [thread:$0]  %s714, 256, %s7, [#allocation4], 128, 128, 8
    $region49: #{tpu_custom_call.1} parent=1 // pred_fallthru
      _
    // Predicated region
    $region50: #{tpu_custom_call.1} parent=1 // pred_check
      _
    $region51: #{tpu_custom_call.1} parent=1 // pred_check_branch
      %721 = sbr.rel (0) target = $region53
    $region52: #{tpu_custom_call.1} parent=1 // pred_region
      %s723 = ssub.s32 256, 256
      %724 = vsyncadd [#allocation12], %s723
      %s725 = sshll.u32 [#allocation11], 4
      %s726 = int_to_ptr.vmem [resolvable:$true] %s725
      %731 = dma.vmem_to_hbm [thread:$0]  %s726, 256, %s8, [#allocation12], 128, 128, 8
    $region53: #{tpu_custom_call.1} parent=1 // pred_fallthru
      _
    // Predicated region
    $region54: #{tpu_custom_call.1} parent=1 // pred_check
      _
    $region55: #{tpu_custom_call.1} parent=1 // pred_check_branch
      %733 = sbr.rel (0) target = $region57
    $region56: #{tpu_custom_call.1} parent=1 // pred_region
      %734 = dma.done [#allocation4], 256
    $region57: #{tpu_custom_call.1} parent=1 // pred_fallthru
      _
    // Predicated region
    $region58: #{tpu_custom_call.1} parent=1 // pred_check
      _
    $region59: #{tpu_custom_call.1} parent=1 // pred_check_branch
      %736 = sbr.rel (0) target = $region61
    $region60: #{tpu_custom_call.1} parent=1 // pred_region
      %737 = dma.done [#allocation12], 256
    $region61: #{tpu_custom_call.1} parent=1 // pred_fallthru
      _
    %738 = vsyncpa [#allocation3], 1
    %739 = vsyncpa [#allocation6], 1
    %740 = vsyncpa [#allocation9], 1
    %741 = vsyncpa [#allocation4], 1
    %742 = vsyncpa [#allocation12], 1

</llo_original>
